<compile_context>
chip_gen: v7x
topology: tpu7x:2x2x1
jax: 0.10.0
libtpu: 0.0.40
codegen_flags: <defaults>
</compile_context>

<pallas_src>
import jax
import jax.numpy as jnp
from jax.experimental import pallas as pl
from jax.experimental.pallas import tpu as pltpu

LPAD = 8   # leading spatial pad (keeps the interior scratch store sublane-aligned)
RPAD = 8   # trailing spatial pad (>=6 needed for the 13x13 reach; 8 keeps the
           # padded extent a multiple of 8 for aligned border stores)


def _neg_fill(dtype):
    if jnp.issubdtype(dtype, jnp.floating):
        return jnp.array(-jnp.inf, dtype)
    return jnp.array(jnp.iinfo(dtype).min, dtype)


def _spp_kernel(x_ref, o_ref, xp_ref):
    """Channels-last SPP for one NC tile.

    x_ref : (H, W, CT)          input tile (lanes = channels)
    o_ref : (3, H, W, CT)       [pool5, pool9, pool13]
    xp_ref: (H+16, W+16, CT)    VMEM scratch holding the -inf padded plane
    """
    x = x_ref[...]
    H, W, CT = x.shape
    Hp, Wp, _ = xp_ref.shape
    neg = _neg_fill(x.dtype)

    # --- on-chip padding: border-only -inf fill; interior overwritten below.
    #     (Per-step fill, NOT program_id-gated: each core owns its scratch.)
    xp_ref[:LPAD, :, :] = jnp.full((LPAD, Wp, CT), neg, x.dtype)
    xp_ref[LPAD + H:, :, :] = jnp.full((Hp - LPAD - H, Wp, CT), neg, x.dtype)
    xp_ref[LPAD:LPAD + H, :LPAD, :] = jnp.full((H, LPAD, CT), neg, x.dtype)
    xp_ref[LPAD:LPAD + H, LPAD + W:, :] = jnp.full((H, Wp - LPAD - W, CT), neg, x.dtype)
    xp_ref[LPAD:LPAD + H, LPAD:LPAD + W, :] = x
    xp = xp_ref[...]                                   # (H+16, W+16, CT)

    # --- row pass (H axis = outer dim; shifts are free vreg-group offsets) ---
    # log-step running maxima: a_k[i] = max(xp[i : i+k]) along rows.
    a2 = jnp.maximum(xp[:-1], xp[1:])                  # window 2
    a4 = jnp.maximum(a2[:-2], a2[2:])                  # window 4
    a8 = jnp.maximum(a4[:-4], a4[4:])                  # window 8
    r5 = jnp.maximum(a4[6:6 + H], a4[7:7 + H])         # 5-row max (centred)
    r9 = jnp.maximum(a8[4:4 + H], a8[5:5 + H])         # 9-row max
    r13 = jnp.maximum(a8[2:2 + H], a8[7:7 + H])        # 13-row max

    # --- column pass (W axis = sublane dim), log-step again per pool size ---
    def col_pool(r, k):
        b2 = jnp.maximum(r[:, :-1], r[:, 1:])
        b4 = jnp.maximum(b2[:, :-2], b2[:, 2:])
        if k == 5:
            return jnp.maximum(b4[:, 6:6 + W], b4[:, 7:7 + W])
        b8 = jnp.maximum(b4[:, :-4], b4[:, 4:])
        if k == 9:
            return jnp.maximum(b8[:, 4:4 + W], b8[:, 5:5 + W])
        return jnp.maximum(b8[:, 2:2 + W], b8[:, 7:7 + W])   # k == 13

    o_ref[0] = col_pool(r5, 5)
    o_ref[1] = col_pool(r9, 9)
    o_ref[2] = col_pool(r13, 13)


def _vmem_capacity_bytes():
    """Per-core VMEM capacity, with a conservative (v7x) fallback."""
    try:
        info = pltpu.get_tpu_info()
        cap = getattr(info, "vmem_capacity_bytes", None)
        if cap:
            return int(cap)
    except Exception:
        pass
    return 64 * 1024 * 1024


def _choose_nc_tile(NC, H, W, itemsize, vmem_cap):
    """Largest lane tile (multiple of 128) whose working set fits the VMEM
    budget, capped so big-channel cases still get >= 2 grid steps (v7x 2 TCs)."""
    hp, wp = H + LPAD + RPAD, W + LPAD + RPAD
    # per-lane-channel bytes: double-buffered in block + double-buffered
    # 3-branch out block + padded scratch + headroom for log-step planes.
    per_c = itemsize * (2 * H * W + 2 * 3 * H * W + 9 * hp * wp)
    budget = int(0.55 * vmem_cap)
    cap = (budget // max(per_c, 1)) // 128 * 128
    cap = max(128, min(cap, 512))          # >=128 lanes; >512 gains little
    if NC <= 128:
        return NC                          # single (partially masked) tile
    if NC <= 256:
        return 128                         # 2 grid steps
    half = ((NC + 1) // 2 + 127) // 128 * 128
    return max(128, min(cap, half))        # >= 2 grid steps, VMEM-bounded


def spp(x):
    """x: (N, C, H, W) -> (N, 4*C, H, W), matching the torch SPP."""
    N, C, H, W = x.shape
    NC = N * C
    dtype = x.dtype
    itemsize = jnp.dtype(dtype).itemsize

    vmem_cap = _vmem_capacity_bytes()
    nc_tile = _choose_nc_tile(NC, H, W, itemsize, vmem_cap)
    ncp = pl.cdiv(NC, nc_tile) * nc_tile

    # Channels-last internal layout: N*C on the lane axis (layout plumbing).
    # TODO(synk): with a channels-last caller both wrapper transposes vanish.
    x_cl = jnp.transpose(x, (2, 3, 0, 1)).reshape(H, W, NC)
    if ncp != NC:
        x_cl = jnp.pad(x_cl, ((0, 0), (0, 0), (0, ncp - NC)))

    hp, wp = H + LPAD + RPAD, W + LPAD + RPAD
    vmem_limit = int(min(0.9 * vmem_cap, 128 * 1024 * 1024))

    pooled = pl.pallas_call(
        _spp_kernel,
        out_shape=jax.ShapeDtypeStruct((3, H, W, ncp), dtype),
        grid_spec=pltpu.PrefetchScalarGridSpec(
            num_scalar_prefetch=0,
            grid=(ncp // nc_tile,),
            in_specs=[pl.BlockSpec((H, W, nc_tile), lambda i: (0, 0, i))],
            out_specs=pl.BlockSpec((3, H, W, nc_tile), lambda i: (0, 0, 0, i)),
            scratch_shapes=[pltpu.VMEM((hp, wp, nc_tile), dtype)],
        ),
        compiler_params=pltpu.CompilerParams(
            dimension_semantics=("parallel",),
            vmem_limit_bytes=vmem_limit,
        ),
    )(x_cl)

    pooled = pooled[..., :NC]                # drop channel padding (no-op if none)
    # (3,H,W,N,C) -> (N,3,C,H,W) -> (N,3C,H,W); channel order [pool5|pool9|pool13].
    pooled = jnp.transpose(pooled.reshape(3, H, W, N, C), (3, 0, 4, 1, 2))
    pooled = pooled.reshape(N, 3 * C, H, W)
    # Identity branch concatenated at the JAX level (matches torch.cat([...,x],1)).
    return jnp.concatenate([pooled, x], axis=1)


def _spp_ref(x):
    """Pure-JAX reference using reduce_window (matches F.max_pool2d pads)."""
    outs = []
    for k in (5, 9, 13):
        p = k // 2
        outs.append(
            jax.lax.reduce_window(
                x,
                -jnp.inf,
                jax.lax.max,
                window_dimensions=(1, 1, k, k),
                window_strides=(1, 1, 1, 1),
                padding=((0, 0), (0, 0), (p, p), (p, p)),
            )
        )
    outs.append(x)
    return jnp.concatenate(outs, axis=1)


if __name__ == "__main__":
    key = jax.random.PRNGKey(0)
    N, C, H, W = 2, 4, 16, 16
    x = jax.random.normal(key, (N, C, H, W), dtype=jnp.float32)

    out = jax.block_until_ready(jax.jit(spp)(x))

    ref = _spp_ref(x)
    assert out.shape == (N, 4 * C, H, W), out.shape
    assert jnp.allclose(out, ref), "mismatch vs reference"

    print("KERNEL_OK")
</pallas_src>

<mosaic_0001>
module attributes {stable_mosaic.version = 11 : i64} {
  func.func @_spp_kernel(%arg0: i32, %arg1: memref<16x16x8xf32, #tpu.memory_space<vmem>>, %arg2: memref<3x16x16x8xf32, #tpu.memory_space<vmem>>, %arg3: memref<32x32x8xf32, #tpu.memory_space<vmem>>) attributes {dimension_semantics = [#tpu.dimension_semantics<parallel>], iteration_bounds = array<i64: 1>, scalar_prefetch = 0 : i64, scratch_operands = 1 : i64, tpu.core_type = #tpu.core_type<tc>, window_params = [{transform_indices = @transform_0, window_bounds = array<i64: 16, 16, 8>}, {transform_indices = @transform_1, window_bounds = array<i64: 3, 16, 16, 8>}]} {
    %c0 = arith.constant 0 : index
    %c0_0 = arith.constant 0 : index
    %c0_1 = arith.constant 0 : index
    %0 = vector.load %arg1[%c0, %c0_0, %c0_1] : memref<16x16x8xf32, #tpu.memory_space<vmem>>, vector<16x16x8xf32>
    %cst = arith.constant 0xFF800000 : f32
    %1 = vector.broadcast %cst : f32 to vector<8x32x8xf32>
    %c0_2 = arith.constant 0 : index
    %c0_3 = arith.constant 0 : index
    %c0_4 = arith.constant 0 : index
    %2 = vector.load %arg3[%c0_2, %c0_3, %c0_4] : memref<32x32x8xf32, #tpu.memory_space<vmem>>, vector<8x32x8xf32>
    tpu.vector_store %arg3[%c0_2, %c0_3, %c0_4], %1 {strides = array<i32>} : memref<32x32x8xf32, #tpu.memory_space<vmem>>, vector<8x32x8xf32>,
    %cst_5 = arith.constant 0xFF800000 : f32
    %3 = vector.broadcast %cst_5 : f32 to vector<8x32x8xf32>
    %c24 = arith.constant 24 : index
    %c0_6 = arith.constant 0 : index
    %c0_7 = arith.constant 0 : index
    %4 = vector.load %arg3[%c24, %c0_6, %c0_7] : memref<32x32x8xf32, #tpu.memory_space<vmem>>, vector<8x32x8xf32>
    tpu.vector_store %arg3[%c24, %c0_6, %c0_7], %3 {strides = array<i32>} : memref<32x32x8xf32, #tpu.memory_space<vmem>>, vector<8x32x8xf32>,
    %cst_8 = arith.constant 0xFF800000 : f32
    %5 = vector.broadcast %cst_8 : f32 to vector<16x8x8xf32>
    %c8 = arith.constant 8 : index
    %c0_9 = arith.constant 0 : index
    %c0_10 = arith.constant 0 : index
    %6 = vector.load %arg3[%c8, %c0_9, %c0_10] : memref<32x32x8xf32, #tpu.memory_space<vmem>>, vector<16x8x8xf32>
    tpu.vector_store %arg3[%c8, %c0_9, %c0_10], %5 {strides = array<i32>} : memref<32x32x8xf32, #tpu.memory_space<vmem>>, vector<16x8x8xf32>,
    %cst_11 = arith.constant 0xFF800000 : f32
    %7 = vector.broadcast %cst_11 : f32 to vector<16x8x8xf32>
    %c8_12 = arith.constant 8 : index
    %c24_13 = arith.constant 24 : index
    %c0_14 = arith.constant 0 : index
    %8 = vector.load %arg3[%c8_12, %c24_13, %c0_14] : memref<32x32x8xf32, #tpu.memory_space<vmem>>, vector<16x8x8xf32>
    tpu.vector_store %arg3[%c8_12, %c24_13, %c0_14], %7 {strides = array<i32>} : memref<32x32x8xf32, #tpu.memory_space<vmem>>, vector<16x8x8xf32>,
    %c8_15 = arith.constant 8 : index
    %c8_16 = arith.constant 8 : index
    %c0_17 = arith.constant 0 : index
    %9 = vector.load %arg3[%c8_15, %c8_16, %c0_17] : memref<32x32x8xf32, #tpu.memory_space<vmem>>, vector<16x16x8xf32>
    tpu.vector_store %arg3[%c8_15, %c8_16, %c0_17], %0 {strides = array<i32>} : memref<32x32x8xf32, #tpu.memory_space<vmem>>, vector<16x16x8xf32>,
    %c0_18 = arith.constant 0 : index
    %c0_19 = arith.constant 0 : index
    %c0_20 = arith.constant 0 : index
    %10 = vector.load %arg3[%c0_18, %c0_19, %c0_20] : memref<32x32x8xf32, #tpu.memory_space<vmem>>, vector<32x32x8xf32>
    %11 = vector.extract_strided_slice %10 {offsets = [0, 0, 0], sizes = [31, 32, 8], strides = [1, 1, 1]} : vector<32x32x8xf32> to vector<31x32x8xf32>
    %12 = vector.extract_strided_slice %10 {offsets = [1, 0, 0], sizes = [31, 32, 8], strides = [1, 1, 1]} : vector<32x32x8xf32> to vector<31x32x8xf32>
    %13 = arith.maximumf %11, %12 : vector<31x32x8xf32>
    %14 = vector.extract_strided_slice %13 {offsets = [0, 0, 0], sizes = [29, 32, 8], strides = [1, 1, 1]} : vector<31x32x8xf32> to vector<29x32x8xf32>
    %15 = vector.extract_strided_slice %13 {offsets = [2, 0, 0], sizes = [29, 32, 8], strides = [1, 1, 1]} : vector<31x32x8xf32> to vector<29x32x8xf32>
    %16 = arith.maximumf %14, %15 : vector<29x32x8xf32>
    %17 = vector.extract_strided_slice %16 {offsets = [0, 0, 0], sizes = [25, 32, 8], strides = [1, 1, 1]} : vector<29x32x8xf32> to vector<25x32x8xf32>
    %18 = vector.extract_strided_slice %16 {offsets = [4, 0, 0], sizes = [25, 32, 8], strides = [1, 1, 1]} : vector<29x32x8xf32> to vector<25x32x8xf32>
    %19 = arith.maximumf %17, %18 : vector<25x32x8xf32>
    %20 = vector.extract_strided_slice %16 {offsets = [6, 0, 0], sizes = [16, 32, 8], strides = [1, 1, 1]} : vector<29x32x8xf32> to vector<16x32x8xf32>
    %21 = vector.extract_strided_slice %16 {offsets = [7, 0, 0], sizes = [16, 32, 8], strides = [1, 1, 1]} : vector<29x32x8xf32> to vector<16x32x8xf32>
    %22 = arith.maximumf %20, %21 : vector<16x32x8xf32>
    %23 = vector.extract_strided_slice %19 {offsets = [4, 0, 0], sizes = [16, 32, 8], strides = [1, 1, 1]} : vector<25x32x8xf32> to vector<16x32x8xf32>
    %24 = vector.extract_strided_slice %19 {offsets = [5, 0, 0], sizes = [16, 32, 8], strides = [1, 1, 1]} : vector<25x32x8xf32> to vector<16x32x8xf32>
    %25 = arith.maximumf %23, %24 : vector<16x32x8xf32>
    %26 = vector.extract_strided_slice %19 {offsets = [2, 0, 0], sizes = [16, 32, 8], strides = [1, 1, 1]} : vector<25x32x8xf32> to vector<16x32x8xf32>
    %27 = vector.extract_strided_slice %19 {offsets = [7, 0, 0], sizes = [16, 32, 8], strides = [1, 1, 1]} : vector<25x32x8xf32> to vector<16x32x8xf32>
    %28 = arith.maximumf %26, %27 : vector<16x32x8xf32>
    %29 = vector.extract_strided_slice %22 {offsets = [0, 0, 0], sizes = [16, 31, 8], strides = [1, 1, 1]} : vector<16x32x8xf32> to vector<16x31x8xf32>
    %30 = vector.extract_strided_slice %22 {offsets = [0, 1, 0], sizes = [16, 31, 8], strides = [1, 1, 1]} : vector<16x32x8xf32> to vector<16x31x8xf32>
    %31 = arith.maximumf %29, %30 : vector<16x31x8xf32>
    %32 = vector.extract_strided_slice %31 {offsets = [0, 0, 0], sizes = [16, 29, 8], strides = [1, 1, 1]} : vector<16x31x8xf32> to vector<16x29x8xf32>
    %33 = vector.extract_strided_slice %31 {offsets = [0, 2, 0], sizes = [16, 29, 8], strides = [1, 1, 1]} : vector<16x31x8xf32> to vector<16x29x8xf32>
    %34 = arith.maximumf %32, %33 : vector<16x29x8xf32>
    %35 = vector.extract_strided_slice %34 {offsets = [0, 6, 0], sizes = [16, 16, 8], strides = [1, 1, 1]} : vector<16x29x8xf32> to vector<16x16x8xf32>
    %36 = vector.extract_strided_slice %34 {offsets = [0, 7, 0], sizes = [16, 16, 8], strides = [1, 1, 1]} : vector<16x29x8xf32> to vector<16x16x8xf32>
    %37 = arith.maximumf %35, %36 : vector<16x16x8xf32>
    %c0_21 = arith.constant 0 : index
    %c0_22 = arith.constant 0 : index
    %c0_23 = arith.constant 0 : index
    %c0_24 = arith.constant 0 : index
    %38 = vector.load %arg2[%c0_21, %c0_22, %c0_23, %c0_24] : memref<3x16x16x8xf32, #tpu.memory_space<vmem>>, vector<1x16x16x8xf32>
    %39 = vector.shape_cast %38 : vector<1x16x16x8xf32> to vector<16x16x8xf32>
    %40 = vector.shape_cast %37 : vector<16x16x8xf32> to vector<1x16x16x8xf32>
    tpu.vector_store %arg2[%c0_21, %c0_22, %c0_23, %c0_24], %40 {strides = array<i32>} : memref<3x16x16x8xf32, #tpu.memory_space<vmem>>, vector<1x16x16x8xf32>,
    %41 = vector.extract_strided_slice %25 {offsets = [0, 0, 0], sizes = [16, 31, 8], strides = [1, 1, 1]} : vector<16x32x8xf32> to vector<16x31x8xf32>
    %42 = vector.extract_strided_slice %25 {offsets = [0, 1, 0], sizes = [16, 31, 8], strides = [1, 1, 1]} : vector<16x32x8xf32> to vector<16x31x8xf32>
    %43 = arith.maximumf %41, %42 : vector<16x31x8xf32>
    %44 = vector.extract_strided_slice %43 {offsets = [0, 0, 0], sizes = [16, 29, 8], strides = [1, 1, 1]} : vector<16x31x8xf32> to vector<16x29x8xf32>
    %45 = vector.extract_strided_slice %43 {offsets = [0, 2, 0], sizes = [16, 29, 8], strides = [1, 1, 1]} : vector<16x31x8xf32> to vector<16x29x8xf32>
    %46 = arith.maximumf %44, %45 : vector<16x29x8xf32>
    %47 = vector.extract_strided_slice %46 {offsets = [0, 0, 0], sizes = [16, 25, 8], strides = [1, 1, 1]} : vector<16x29x8xf32> to vector<16x25x8xf32>
    %48 = vector.extract_strided_slice %46 {offsets = [0, 4, 0], sizes = [16, 25, 8], strides = [1, 1, 1]} : vector<16x29x8xf32> to vector<16x25x8xf32>
    %49 = arith.maximumf %47, %48 : vector<16x25x8xf32>
    %50 = vector.extract_strided_slice %49 {offsets = [0, 4, 0], sizes = [16, 16, 8], strides = [1, 1, 1]} : vector<16x25x8xf32> to vector<16x16x8xf32>
    %51 = vector.extract_strided_slice %49 {offsets = [0, 5, 0], sizes = [16, 16, 8], strides = [1, 1, 1]} : vector<16x25x8xf32> to vector<16x16x8xf32>
    %52 = arith.maximumf %50, %51 : vector<16x16x8xf32>
    %c1 = arith.constant 1 : index
    %c0_25 = arith.constant 0 : index
    %c0_26 = arith.constant 0 : index
    %c0_27 = arith.constant 0 : index
    %53 = vector.load %arg2[%c1, %c0_25, %c0_26, %c0_27] : memref<3x16x16x8xf32, #tpu.memory_space<vmem>>, vector<1x16x16x8xf32>
    %54 = vector.shape_cast %53 : vector<1x16x16x8xf32> to vector<16x16x8xf32>
    %55 = vector.shape_cast %52 : vector<16x16x8xf32> to vector<1x16x16x8xf32>
    tpu.vector_store %arg2[%c1, %c0_25, %c0_26, %c0_27], %55 {strides = array<i32>} : memref<3x16x16x8xf32, #tpu.memory_space<vmem>>, vector<1x16x16x8xf32>,
    %56 = vector.extract_strided_slice %28 {offsets = [0, 0, 0], sizes = [16, 31, 8], strides = [1, 1, 1]} : vector<16x32x8xf32> to vector<16x31x8xf32>
    %57 = vector.extract_strided_slice %28 {offsets = [0, 1, 0], sizes = [16, 31, 8], strides = [1, 1, 1]} : vector<16x32x8xf32> to vector<16x31x8xf32>
    %58 = arith.maximumf %56, %57 : vector<16x31x8xf32>
    %59 = vector.extract_strided_slice %58 {offsets = [0, 0, 0], sizes = [16, 29, 8], strides = [1, 1, 1]} : vector<16x31x8xf32> to vector<16x29x8xf32>
    %60 = vector.extract_strided_slice %58 {offsets = [0, 2, 0], sizes = [16, 29, 8], strides = [1, 1, 1]} : vector<16x31x8xf32> to vector<16x29x8xf32>
    %61 = arith.maximumf %59, %60 : vector<16x29x8xf32>
    %62 = vector.extract_strided_slice %61 {offsets = [0, 0, 0], sizes = [16, 25, 8], strides = [1, 1, 1]} : vector<16x29x8xf32> to vector<16x25x8xf32>
    %63 = vector.extract_strided_slice %61 {offsets = [0, 4, 0], sizes = [16, 25, 8], strides = [1, 1, 1]} : vector<16x29x8xf32> to vector<16x25x8xf32>
    %64 = arith.maximumf %62, %63 : vector<16x25x8xf32>
    %65 = vector.extract_strided_slice %64 {offsets = [0, 2, 0], sizes = [16, 16, 8], strides = [1, 1, 1]} : vector<16x25x8xf32> to vector<16x16x8xf32>
    %66 = vector.extract_strided_slice %64 {offsets = [0, 7, 0], sizes = [16, 16, 8], strides = [1, 1, 1]} : vector<16x25x8xf32> to vector<16x16x8xf32>
    %67 = arith.maximumf %65, %66 : vector<16x16x8xf32>
    %c2 = arith.constant 2 : index
    %c0_28 = arith.constant 0 : index
    %c0_29 = arith.constant 0 : index
    %c0_30 = arith.constant 0 : index
    %68 = vector.load %arg2[%c2, %c0_28, %c0_29, %c0_30] : memref<3x16x16x8xf32, #tpu.memory_space<vmem>>, vector<1x16x16x8xf32>
    %69 = vector.shape_cast %68 : vector<1x16x16x8xf32> to vector<16x16x8xf32>
    %70 = vector.shape_cast %67 : vector<16x16x8xf32> to vector<1x16x16x8xf32>
    tpu.vector_store %arg2[%c2, %c0_28, %c0_29, %c0_30], %70 {strides = array<i32>} : memref<3x16x16x8xf32, #tpu.memory_space<vmem>>, vector<1x16x16x8xf32>,
    return
  }
  func.func @transform_0(%arg0: i32) -> (i32, i32, i32) {
    %c0_i32 = arith.constant 0 : i32
    %c0_i32_0 = arith.constant 0 : i32
    %c0_i32_1 = arith.constant 0 : i32
    return %c0_i32, %c0_i32_0, %arg0 : i32, i32, i32
  }
  func.func @transform_1(%arg0: i32) -> (i32, i32, i32, i32) {
    %c0_i32 = arith.constant 0 : i32
    %c0_i32_0 = arith.constant 0 : i32
    %c0_i32_1 = arith.constant 0 : i32
    %c0_i32_2 = arith.constant 0 : i32
    return %c0_i32, %c0_i32_0, %c0_i32_1, %arg0 : i32, i32, i32, i32
  }
}

</mosaic_0001>

<llo_original>
// kernel: spp.1
$region0: #{spp.1}
  #allocation0 [shape = 'u32[]', space=smem, size = 0x4, offset = 0x4, fixed_abs, tag = 'smem constant byte address 0x4 - core index']
  #allocation1 [shape = 'u32[144,128]{1,0:T(1,128)}', space=vmem, size = 0x12000, scoped, tag = 'internal scratch']
  #allocation2 [shape = 'f32[32,32,8]{2,1,0:T(8,128)}', space=vmem, size = 0x80000, scoped, tag = 'scratch operand']
  %s0 = inlined_call_operand.vmem [shape: f32[16,16,8], index: 0, kind: input, shape index: {}]
  %s1 = inlined_call_operand.vmem [shape: f32[3,16,16,8], index: 1, kind: output, shape index: {}]
  %s2 = sld [smem:[#allocation0]]
  $region14: #{spp.1} parent=0
    _
  %s4 = ssub.s32 1, %s2
  %s5 = scalar_select 0, %s4, %s2
  // Predicated region
  $region2: #{spp.1} parent=0 // pred_check
    _
  $region3: #{spp.1} parent=0 // pred_check_branch
    %7 = sbr.rel (0) target = $region5
  $region4: #{spp.1} parent=0 // pred_region
    _
  $region5: #{spp.1} parent=0 // pred_fallthru
    _
  %v8 = vld [vmem:[%s0] sm:$0xff]
  %v9 = vld [vmem:[%s0 + $0x8] sm:$0xff]
  %v10 = vld [vmem:[%s0 + $0x10] sm:$0xff]
  %v11 = vld [vmem:[%s0 + $0x18] sm:$0xff]
  %v12 = vld [vmem:[%s0 + $0x20] sm:$0xff]
  %v13 = vld [vmem:[%s0 + $0x28] sm:$0xff]
  %v14 = vld [vmem:[%s0 + $0x30] sm:$0xff]
  %v15 = vld [vmem:[%s0 + $0x38] sm:$0xff]
  %v16 = vld [vmem:[%s0 + $0x40] sm:$0xff]
  %v17 = vld [vmem:[%s0 + $0x48] sm:$0xff]
  %v18 = vld [vmem:[%s0 + $0x50] sm:$0xff]
  %v19 = vld [vmem:[%s0 + $0x58] sm:$0xff]
  %v20 = vld [vmem:[%s0 + $0x60] sm:$0xff]
  %v21 = vld [vmem:[%s0 + $0x68] sm:$0xff]
  %v22 = vld [vmem:[%s0 + $0x70] sm:$0xff]
  %v23 = vld [vmem:[%s0 + $0x78] sm:$0xff]
  %v24 = vld [vmem:[%s0 + $0x80] sm:$0xff]
  %v25 = vld [vmem:[%s0 + $0x88] sm:$0xff]
  %v26 = vld [vmem:[%s0 + $0x90] sm:$0xff]
  %v27 = vld [vmem:[%s0 + $0x98] sm:$0xff]
  %v28 = vld [vmem:[%s0 + $0xa0] sm:$0xff]
  %v29 = vld [vmem:[%s0 + $0xa8] sm:$0xff]
  %v30 = vld [vmem:[%s0 + $0xb0] sm:$0xff]
  %v31 = vld [vmem:[%s0 + $0xb8] sm:$0xff]
  %v32 = vld [vmem:[%s0 + $0xc0] sm:$0xff]
  %v33 = vld [vmem:[%s0 + $0xc8] sm:$0xff]
  %v34 = vld [vmem:[%s0 + $0xd0] sm:$0xff]
  %v35 = vld [vmem:[%s0 + $0xd8] sm:$0xff]
  %v36 = vld [vmem:[%s0 + $0xe0] sm:$0xff]
  %v37 = vld [vmem:[%s0 + $0xe8] sm:$0xff]
  %v38 = vld [vmem:[%s0 + $0xf0] sm:$0xff]
  %v39 = vld [vmem:[%s0 + $0xf8] sm:$0xff]
  %vm40 = vcmask 64512
  %41 = vst.msk [vmem:[#allocation2] sm:$0xff] %vm40, -inf
  %42 = vst.msk [vmem:[#allocation2 + $0x8] sm:$0xff] %vm40, -inf
  %43 = vst.msk [vmem:[#allocation2 + $0x10] sm:$0xff] %vm40, -inf
  %44 = vst.msk [vmem:[#allocation2 + $0x18] sm:$0xff] %vm40, -inf
  %45 = vst.msk [vmem:[#allocation2 + $0x20] sm:$0xff] %vm40, -inf
  %46 = vst.msk [vmem:[#allocation2 + $0x28] sm:$0xff] %vm40, -inf
  %47 = vst.msk [vmem:[#allocation2 + $0x30] sm:$0xff] %vm40, -inf
  %48 = vst.msk [vmem:[#allocation2 + $0x38] sm:$0xff] %vm40, -inf
  %49 = vst.msk [vmem:[#allocation2 + $0x40] sm:$0xff] %vm40, -inf
  %50 = vst.msk [vmem:[#allocation2 + $0x48] sm:$0xff] %vm40, -inf
  %51 = vst.msk [vmem:[#allocation2 + $0x50] sm:$0xff] %vm40, -inf
  %52 = vst.msk [vmem:[#allocation2 + $0x58] sm:$0xff] %vm40, -inf
  %53 = vst.msk [vmem:[#allocation2 + $0x60] sm:$0xff] %vm40, -inf
  %54 = vst.msk [vmem:[#allocation2 + $0x68] sm:$0xff] %vm40, -inf
  %55 = vst.msk [vmem:[#allocation2 + $0x70] sm:$0xff] %vm40, -inf
  %56 = vst.msk [vmem:[#allocation2 + $0x78] sm:$0xff] %vm40, -inf
  %57 = vst.msk [vmem:[#allocation2 + $0x80] sm:$0xff] %vm40, -inf
  %58 = vst.msk [vmem:[#allocation2 + $0x88] sm:$0xff] %vm40, -inf
  %59 = vst.msk [vmem:[#allocation2 + $0x90] sm:$0xff] %vm40, -inf
  %60 = vst.msk [vmem:[#allocation2 + $0x98] sm:$0xff] %vm40, -inf
  %61 = vst.msk [vmem:[#allocation2 + $0xa0] sm:$0xff] %vm40, -inf
  %62 = vst.msk [vmem:[#allocation2 + $0xa8] sm:$0xff] %vm40, -inf
  %63 = vst.msk [vmem:[#allocation2 + $0xb0] sm:$0xff] %vm40, -inf
  %64 = vst.msk [vmem:[#allocation2 + $0xb8] sm:$0xff] %vm40, -inf
  %65 = vst.msk [vmem:[#allocation2 + $0xc0] sm:$0xff] %vm40, -inf
  %66 = vst.msk [vmem:[#allocation2 + $0xc8] sm:$0xff] %vm40, -inf
  %67 = vst.msk [vmem:[#allocation2 + $0xd0] sm:$0xff] %vm40, -inf
  %68 = vst.msk [vmem:[#allocation2 + $0xd8] sm:$0xff] %vm40, -inf
  %69 = vst.msk [vmem:[#allocation2 + $0xe0] sm:$0xff] %vm40, -inf
  %70 = vst.msk [vmem:[#allocation2 + $0xe8] sm:$0xff] %vm40, -inf
  %71 = vst.msk [vmem:[#allocation2 + $0xf0] sm:$0xff] %vm40, -inf
  %72 = vst.msk [vmem:[#allocation2 + $0xf8] sm:$0xff] %vm40, -inf
  %s73 = scalar_lea.vmem [#allocation2], 768
  %74 = vst.msk [vmem:[%s73] sm:$0xff] %vm40, -inf
  %75 = vst.msk [vmem:[%s73 + $0x8] sm:$0xff] %vm40, -inf
  %76 = vst.msk [vmem:[%s73 + $0x10] sm:$0xff] %vm40, -inf
  %77 = vst.msk [vmem:[%s73 + $0x18] sm:$0xff] %vm40, -inf
  %78 = vst.msk [vmem:[%s73 + $0x20] sm:$0xff] %vm40, -inf
  %79 = vst.msk [vmem:[%s73 + $0x28] sm:$0xff] %vm40, -inf
  %80 = vst.msk [vmem:[%s73 + $0x30] sm:$0xff] %vm40, -inf
  %81 = vst.msk [vmem:[%s73 + $0x38] sm:$0xff] %vm40, -inf
  %82 = vst.msk [vmem:[%s73 + $0x40] sm:$0xff] %vm40, -inf
  %83 = vst.msk [vmem:[%s73 + $0x48] sm:$0xff] %vm40, -inf
  %84 = vst.msk [vmem:[%s73 + $0x50] sm:$0xff] %vm40, -inf
  %85 = vst.msk [vmem:[%s73 + $0x58] sm:$0xff] %vm40, -inf
  %86 = vst.msk [vmem:[%s73 + $0x60] sm:$0xff] %vm40, -inf
  %87 = vst.msk [vmem:[%s73 + $0x68] sm:$0xff] %vm40, -inf
  %88 = vst.msk [vmem:[%s73 + $0x70] sm:$0xff] %vm40, -inf
  %89 = vst.msk [vmem:[%s73 + $0x78] sm:$0xff] %vm40, -inf
  %90 = vst.msk [vmem:[%s73 + $0x80] sm:$0xff] %vm40, -inf
  %91 = vst.msk [vmem:[%s73 + $0x88] sm:$0xff] %vm40, -inf
  %92 = vst.msk [vmem:[%s73 + $0x90] sm:$0xff] %vm40, -inf
  %93 = vst.msk [vmem:[%s73 + $0x98] sm:$0xff] %vm40, -inf
  %94 = vst.msk [vmem:[%s73 + $0xa0] sm:$0xff] %vm40, -inf
  %95 = vst.msk [vmem:[%s73 + $0xa8] sm:$0xff] %vm40, -inf
  %96 = vst.msk [vmem:[%s73 + $0xb0] sm:$0xff] %vm40, -inf
  %97 = vst.msk [vmem:[%s73 + $0xb8] sm:$0xff] %vm40, -inf
  %98 = vst.msk [vmem:[%s73 + $0xc0] sm:$0xff] %vm40, -inf
  %99 = vst.msk [vmem:[%s73 + $0xc8] sm:$0xff] %vm40, -inf
  %100 = vst.msk [vmem:[%s73 + $0xd0] sm:$0xff] %vm40, -inf
  %101 = vst.msk [vmem:[%s73 + $0xd8] sm:$0xff] %vm40, -inf
  %102 = vst.msk [vmem:[%s73 + $0xe0] sm:$0xff] %vm40, -inf
  %103 = vst.msk [vmem:[%s73 + $0xe8] sm:$0xff] %vm40, -inf
  %104 = vst.msk [vmem:[%s73 + $0xf0] sm:$0xff] %vm40, -inf
  %105 = vst.msk [vmem:[%s73 + $0xf8] sm:$0xff] %vm40, -inf
  %s106 = scalar_lea.vmem [#allocation2], 256
  %107 = vst.msk [vmem:[%s106] sm:$0xff] %vm40, -inf
  %108 = vst.msk [vmem:[%s106 + $0x20] sm:$0xff] %vm40, -inf
  %109 = vst.msk [vmem:[%s106 + $0x40] sm:$0xff] %vm40, -inf
  %110 = vst.msk [vmem:[%s106 + $0x60] sm:$0xff] %vm40, -inf
  %111 = vst.msk [vmem:[%s106 + $0x80] sm:$0xff] %vm40, -inf
  %112 = vst.msk [vmem:[%s106 + $0xa0] sm:$0xff] %vm40, -inf
  %113 = vst.msk [vmem:[%s106 + $0xc0] sm:$0xff] %vm40, -inf
  %114 = vst.msk [vmem:[%s106 + $0xe0] sm:$0xff] %vm40, -inf
  %115 = vst.msk [vmem:[%s106 + $0x100] sm:$0xff] %vm40, -inf
  %116 = vst.msk [vmem:[%s106 + $0x120] sm:$0xff] %vm40, -inf
  %117 = vst.msk [vmem:[%s106 + $0x140] sm:$0xff] %vm40, -inf
  %118 = vst.msk [vmem:[%s106 + $0x160] sm:$0xff] %vm40, -inf
  %119 = vst.msk [vmem:[%s106 + $0x180] sm:$0xff] %vm40, -inf
  %120 = vst.msk [vmem:[%s106 + $0x1a0] sm:$0xff] %vm40, -inf
  %121 = vst.msk [vmem:[%s106 + $0x1c0] sm:$0xff] %vm40, -inf
  %122 = vst.msk [vmem:[%s106 + $0x1e0] sm:$0xff] %vm40, -inf
  %123 = vst.msk [vmem:[%s106 + $0x18] sm:$0xff] %vm40, -inf
  %124 = vst.msk [vmem:[%s106 + $0x38] sm:$0xff] %vm40, -inf
  %125 = vst.msk [vmem:[%s106 + $0x58] sm:$0xff] %vm40, -inf
  %126 = vst.msk [vmem:[%s106 + $0x78] sm:$0xff] %vm40, -inf
  %127 = vst.msk [vmem:[%s106 + $0x98] sm:$0xff] %vm40, -inf
  %128 = vst.msk [vmem:[%s106 + $0xb8] sm:$0xff] %vm40, -inf
  %129 = vst.msk [vmem:[%s106 + $0xd8] sm:$0xff] %vm40, -inf
  %130 = vst.msk [vmem:[%s106 + $0xf8] sm:$0xff] %vm40, -inf
  %131 = vst.msk [vmem:[%s106 + $0x118] sm:$0xff] %vm40, -inf
  %132 = vst.msk [vmem:[%s106 + $0x138] sm:$0xff] %vm40, -inf
  %133 = vst.msk [vmem:[%s106 + $0x158] sm:$0xff] %vm40, -inf
  %134 = vst.msk [vmem:[%s106 + $0x178] sm:$0xff] %vm40, -inf
  %135 = vst.msk [vmem:[%s106 + $0x198] sm:$0xff] %vm40, -inf
  %136 = vst.msk [vmem:[%s106 + $0x1b8] sm:$0xff] %vm40, -inf
  %137 = vst.msk [vmem:[%s106 + $0x1d8] sm:$0xff] %vm40, -inf
  %138 = vst.msk [vmem:[%s106 + $0x1f8] sm:$0xff] %vm40, -inf
  %139 = vst.msk [vmem:[%s106 + $0x8] sm:$0xff] %vm40, %v8
  %140 = vst.msk [vmem:[%s106 + $0x10] sm:$0xff] %vm40, %v9
  %141 = vst.msk [vmem:[%s106 + $0x28] sm:$0xff] %vm40, %v10
  %142 = vst.msk [vmem:[%s106 + $0x30] sm:$0xff] %vm40, %v11
  %143 = vst.msk [vmem:[%s106 + $0x48] sm:$0xff] %vm40, %v12
  %144 = vst.msk [vmem:[%s106 + $0x50] sm:$0xff] %vm40, %v13
  %145 = vst.msk [vmem:[%s106 + $0x68] sm:$0xff] %vm40, %v14
  %146 = vst.msk [vmem:[%s106 + $0x70] sm:$0xff] %vm40, %v15
  %147 = vst.msk [vmem:[%s106 + $0x88] sm:$0xff] %vm40, %v16
  %148 = vst.msk [vmem:[%s106 + $0x90] sm:$0xff] %vm40, %v17
  %149 = vst.msk [vmem:[%s106 + $0xa8] sm:$0xff] %vm40, %v18
  %150 = vst.msk [vmem:[%s106 + $0xb0] sm:$0xff] %vm40, %v19
  %151 = vst.msk [vmem:[%s106 + $0xc8] sm:$0xff] %vm40, %v20
  %152 = vst.msk [vmem:[%s106 + $0xd0] sm:$0xff] %vm40, %v21
  %153 = vst.msk [vmem:[%s106 + $0xe8] sm:$0xff] %vm40, %v22
  %154 = vst.msk [vmem:[%s106 + $0xf0] sm:$0xff] %vm40, %v23
  %155 = vst.msk [vmem:[%s106 + $0x108] sm:$0xff] %vm40, %v24
  %156 = vst.msk [vmem:[%s106 + $0x110] sm:$0xff] %vm40, %v25
  %157 = vst.msk [vmem:[%s106 + $0x128] sm:$0xff] %vm40, %v26
  %158 = vst.msk [vmem:[%s106 + $0x130] sm:$0xff] %vm40, %v27
  %159 = vst.msk [vmem:[%s106 + $0x148] sm:$0xff] %vm40, %v28
  %160 = vst.msk [vmem:[%s106 + $0x150] sm:$0xff] %vm40, %v29
  %161 = vst.msk [vmem:[%s106 + $0x168] sm:$0xff] %vm40, %v30
  %162 = vst.msk [vmem:[%s106 + $0x170] sm:$0xff] %vm40, %v31
  %163 = vst.msk [vmem:[%s106 + $0x188] sm:$0xff] %vm40, %v32
  %164 = vst.msk [vmem:[%s106 + $0x190] sm:$0xff] %vm40, %v33
  %165 = vst.msk [vmem:[%s106 + $0x1a8] sm:$0xff] %vm40, %v34
  %166 = vst.msk [vmem:[%s106 + $0x1b0] sm:$0xff] %vm40, %v35
  %167 = vst.msk [vmem:[%s106 + $0x1c8] sm:$0xff] %vm40, %v36
  %168 = vst.msk [vmem:[%s106 + $0x1d0] sm:$0xff] %vm40, %v37
  %169 = vst.msk [vmem:[%s106 + $0x1e8] sm:$0xff] %vm40, %v38
  %170 = vst.msk [vmem:[%s106 + $0x1f0] sm:$0xff] %vm40, %v39
  %v171 = vld [vmem:[#allocation2 + $0x40] sm:$0xff]
  %v172 = vld [vmem:[#allocation2 + $0x48] sm:$0xff]
  %v173 = vld [vmem:[#allocation2 + $0x50] sm:$0xff]
  %v174 = vld [vmem:[#allocation2 + $0x58] sm:$0xff]
  %v175 = vld [vmem:[#allocation2 + $0x60] sm:$0xff]
  %v176 = vld [vmem:[#allocation2 + $0x68] sm:$0xff]
  %v177 = vld [vmem:[#allocation2 + $0x70] sm:$0xff]
  %v178 = vld [vmem:[#allocation2 + $0x78] sm:$0xff]
  %v179 = vld [vmem:[#allocation2 + $0x80] sm:$0xff]
  %v180 = vld [vmem:[#allocation2 + $0x88] sm:$0xff]
  %v181 = vld [vmem:[#allocation2 + $0x90] sm:$0xff]
  %v182 = vld [vmem:[#allocation2 + $0x98] sm:$0xff]
  %v183 = vld [vmem:[#allocation2 + $0xa0] sm:$0xff]
  %v184 = vld [vmem:[#allocation2 + $0xa8] sm:$0xff]
  %v185 = vld [vmem:[#allocation2 + $0xb0] sm:$0xff]
  %v186 = vld [vmem:[#allocation2 + $0xb8] sm:$0xff]
  %v187 = vld [vmem:[#allocation2 + $0xc0] sm:$0xff]
  %v188 = vld [vmem:[#allocation2 + $0xc8] sm:$0xff]
  %v189 = vld [vmem:[#allocation2 + $0xd0] sm:$0xff]
  %v190 = vld [vmem:[#allocation2 + $0xd8] sm:$0xff]
  %v191 = vld [vmem:[#allocation2 + $0xe0] sm:$0xff]
  %v192 = vld [vmem:[#allocation2 + $0xe8] sm:$0xff]
  %v193 = vld [vmem:[#allocation2 + $0xf0] sm:$0xff]
  %v194 = vld [vmem:[#allocation2 + $0xf8] sm:$0xff]
  %v195 = vld [vmem:[#allocation2 + $0x100] sm:$0xff]
  %v196 = vld [vmem:[#allocation2 + $0x108] sm:$0xff]
  %v197 = vld [vmem:[#allocation2 + $0x110] sm:$0xff]
  %v198 = vld [vmem:[#allocation2 + $0x118] sm:$0xff]
  %v199 = vld [vmem:[#allocation2 + $0x120] sm:$0xff]
  %v200 = vld [vmem:[#allocation2 + $0x128] sm:$0xff]
  %v201 = vld [vmem:[#allocation2 + $0x130] sm:$0xff]
  %v202 = vld [vmem:[#allocation2 + $0x138] sm:$0xff]
  %v203 = vld [vmem:[#allocation2 + $0x140] sm:$0xff]
  %v204 = vld [vmem:[#allocation2 + $0x148] sm:$0xff]
  %v205 = vld [vmem:[#allocation2 + $0x150] sm:$0xff]
  %v206 = vld [vmem:[#allocation2 + $0x158] sm:$0xff]
  %v207 = vld [vmem:[#allocation2 + $0x160] sm:$0xff]
  %v208 = vld [vmem:[#allocation2 + $0x168] sm:$0xff]
  %v209 = vld [vmem:[#allocation2 + $0x170] sm:$0xff]
  %v210 = vld [vmem:[#allocation2 + $0x178] sm:$0xff]
  %v211 = vld [vmem:[#allocation2 + $0x180] sm:$0xff]
  %v212 = vld [vmem:[#allocation2 + $0x188] sm:$0xff]
  %v213 = vld [vmem:[#allocation2 + $0x190] sm:$0xff]
  %v214 = vld [vmem:[#allocation2 + $0x198] sm:$0xff]
  %v215 = vld [vmem:[#allocation2 + $0x1a0] sm:$0xff]
  %v216 = vld [vmem:[#allocation2 + $0x1a8] sm:$0xff]
  %v217 = vld [vmem:[#allocation2 + $0x1b0] sm:$0xff]
  %v218 = vld [vmem:[#allocation2 + $0x1b8] sm:$0xff]
  %v219 = vld [vmem:[#allocation2 + $0x1c0] sm:$0xff]
  %v220 = vld [vmem:[#allocation2 + $0x1c8] sm:$0xff]
  %v221 = vld [vmem:[#allocation2 + $0x1d0] sm:$0xff]
  %v222 = vld [vmem:[#allocation2 + $0x1d8] sm:$0xff]
  %v223 = vld [vmem:[#allocation2 + $0x1e0] sm:$0xff]
  %v224 = vld [vmem:[#allocation2 + $0x1e8] sm:$0xff]
  %v225 = vld [vmem:[#allocation2 + $0x1f0] sm:$0xff]
  %v226 = vld [vmem:[#allocation2 + $0x1f8] sm:$0xff]
  %v227 = vld [vmem:[#allocation2 + $0x200] sm:$0xff]
  %v228 = vld [vmem:[#allocation2 + $0x208] sm:$0xff]
  %v229 = vld [vmem:[#allocation2 + $0x210] sm:$0xff]
  %v230 = vld [vmem:[#allocation2 + $0x218] sm:$0xff]
  %v231 = vld [vmem:[#allocation2 + $0x220] sm:$0xff]
  %v232 = vld [vmem:[#allocation2 + $0x228] sm:$0xff]
  %v233 = vld [vmem:[#allocation2 + $0x230] sm:$0xff]
  %v234 = vld [vmem:[#allocation2 + $0x238] sm:$0xff]
  %v235 = vld [vmem:[#allocation2 + $0x240] sm:$0xff]
  %v236 = vld [vmem:[#allocation2 + $0x248] sm:$0xff]
  %v237 = vld [vmem:[#allocation2 + $0x250] sm:$0xff]
  %v238 = vld [vmem:[#allocation2 + $0x258] sm:$0xff]
  %v239 = vld [vmem:[#allocation2 + $0x260] sm:$0xff]
  %v240 = vld [vmem:[#allocation2 + $0x268] sm:$0xff]
  %v241 = vld [vmem:[#allocation2 + $0x270] sm:$0xff]
  %v242 = vld [vmem:[#allocation2 + $0x278] sm:$0xff]
  %v243 = vld [vmem:[#allocation2 + $0x280] sm:$0xff]
  %v244 = vld [vmem:[#allocation2 + $0x288] sm:$0xff]
  %v245 = vld [vmem:[#allocation2 + $0x290] sm:$0xff]
  %v246 = vld [vmem:[#allocation2 + $0x298] sm:$0xff]
  %v247 = vld [vmem:[#allocation2 + $0x2a0] sm:$0xff]
  %v248 = vld [vmem:[#allocation2 + $0x2a8] sm:$0xff]
  %v249 = vld [vmem:[#allocation2 + $0x2b0] sm:$0xff]
  %v250 = vld [vmem:[#allocation2 + $0x2b8] sm:$0xff]
  %v251 = vld [vmem:[#allocation2 + $0x2c0] sm:$0xff]
  %v252 = vld [vmem:[#allocation2 + $0x2c8] sm:$0xff]
  %v253 = vld [vmem:[#allocation2 + $0x2d0] sm:$0xff]
  %v254 = vld [vmem:[#allocation2 + $0x2d8] sm:$0xff]
  %v255 = vld [vmem:[#allocation2 + $0x2e0] sm:$0xff]
  %v256 = vld [vmem:[#allocation2 + $0x2e8] sm:$0xff]
  %v257 = vld [vmem:[#allocation2 + $0x2f0] sm:$0xff]
  %v258 = vld [vmem:[#allocation2 + $0x2f8] sm:$0xff]
  %v259 = vld [vmem:[#allocation2 + $0x300] sm:$0xff]
  %v260 = vld [vmem:[#allocation2 + $0x308] sm:$0xff]
  %v261 = vld [vmem:[#allocation2 + $0x310] sm:$0xff]
  %v262 = vld [vmem:[#allocation2 + $0x318] sm:$0xff]
  %v263 = vld [vmem:[#allocation2 + $0x320] sm:$0xff]
  %v264 = vld [vmem:[#allocation2 + $0x328] sm:$0xff]
  %v265 = vld [vmem:[#allocation2 + $0x330] sm:$0xff]
  %v266 = vld [vmem:[#allocation2 + $0x338] sm:$0xff]
  %v267 = vld [vmem:[#allocation2 + $0x340] sm:$0xff]
  %v268 = vld [vmem:[#allocation2 + $0x348] sm:$0xff]
  %v269 = vld [vmem:[#allocation2 + $0x350] sm:$0xff]
  %v270 = vld [vmem:[#allocation2 + $0x358] sm:$0xff]
  %v271 = vld [vmem:[#allocation2 + $0x360] sm:$0xff]
  %v272 = vld [vmem:[#allocation2 + $0x368] sm:$0xff]
  %v273 = vld [vmem:[#allocation2 + $0x370] sm:$0xff]
  %v274 = vld [vmem:[#allocation2 + $0x378] sm:$0xff]
  %v275 = vld [vmem:[#allocation2 + $0x380] sm:$0xff]
  %v276 = vld [vmem:[#allocation2 + $0x388] sm:$0xff]
  %v277 = vld [vmem:[#allocation2 + $0x390] sm:$0xff]
  %v278 = vld [vmem:[#allocation2 + $0x398] sm:$0xff]
  %v279 = vld [vmem:[#allocation2 + $0x3a0] sm:$0xff]
  %v280 = vld [vmem:[#allocation2 + $0x3a8] sm:$0xff]
  %v281 = vld [vmem:[#allocation2 + $0x3b0] sm:$0xff]
  %v282 = vld [vmem:[#allocation2 + $0x3b8] sm:$0xff]
  %v283 = vmax.f32 %v171, %v175
  %v284 = vmax.f32 %v172, %v176
  %v285 = vmax.f32 %v173, %v177
  %v286 = vmax.f32 %v174, %v178
  %v287 = vmax.f32 %v175, %v179
  %v288 = vmax.f32 %v176, %v180
  %v289 = vmax.f32 %v177, %v181
  %v290 = vmax.f32 %v178, %v182
  %v291 = vmax.f32 %v179, %v183
  %v292 = vmax.f32 %v180, %v184
  %v293 = vmax.f32 %v181, %v185
  %v294 = vmax.f32 %v182, %v186
  %v295 = vmax.f32 %v183, %v187
  %v296 = vmax.f32 %v184, %v188
  %v297 = vmax.f32 %v185, %v189
  %v298 = vmax.f32 %v186, %v190
  %v299 = vmax.f32 %v187, %v191
  %v300 = vmax.f32 %v188, %v192
  %v301 = vmax.f32 %v189, %v193
  %v302 = vmax.f32 %v190, %v194
  %v303 = vmax.f32 %v191, %v195
  %v304 = vmax.f32 %v192, %v196
  %v305 = vmax.f32 %v193, %v197
  %v306 = vmax.f32 %v194, %v198
  %v307 = vmax.f32 %v195, %v199
  %v308 = vmax.f32 %v196, %v200
  %v309 = vmax.f32 %v197, %v201
  %v310 = vmax.f32 %v198, %v202
  %v311 = vmax.f32 %v199, %v203
  %v312 = vmax.f32 %v200, %v204
  %v313 = vmax.f32 %v201, %v205
  %v314 = vmax.f32 %v202, %v206
  %v315 = vmax.f32 %v203, %v207
  %v316 = vmax.f32 %v204, %v208
  %v317 = vmax.f32 %v205, %v209
  %v318 = vmax.f32 %v206, %v210
  %v319 = vmax.f32 %v207, %v211
  %v320 = vmax.f32 %v208, %v212
  %v321 = vmax.f32 %v209, %v213
  %v322 = vmax.f32 %v210, %v214
  %v323 = vmax.f32 %v211, %v215
  %v324 = vmax.f32 %v212, %v216
  %v325 = vmax.f32 %v213, %v217
  %v326 = vmax.f32 %v214, %v218
  %v327 = vmax.f32 %v215, %v219
  %v328 = vmax.f32 %v216, %v220
  %v329 = vmax.f32 %v217, %v221
  %v330 = vmax.f32 %v218, %v222
  %v331 = vmax.f32 %v219, %v223
  %v332 = vmax.f32 %v220, %v224
  %v333 = vmax.f32 %v221, %v225
  %v334 = vmax.f32 %v222, %v226
  %v335 = vmax.f32 %v223, %v227
  %v336 = vmax.f32 %v224, %v228
  %v337 = vmax.f32 %v225, %v229
  %v338 = vmax.f32 %v226, %v230
  %v339 = vmax.f32 %v227, %v231
  %v340 = vmax.f32 %v228, %v232
  %v341 = vmax.f32 %v229, %v233
  %v342 = vmax.f32 %v230, %v234
  %v343 = vmax.f32 %v231, %v235
  %v344 = vmax.f32 %v232, %v236
  %v345 = vmax.f32 %v233, %v237
  %v346 = vmax.f32 %v234, %v238
  %v347 = vmax.f32 %v235, %v239
  %v348 = vmax.f32 %v236, %v240
  %v349 = vmax.f32 %v237, %v241
  %v350 = vmax.f32 %v238, %v242
  %v351 = vmax.f32 %v239, %v243
  %v352 = vmax.f32 %v240, %v244
  %v353 = vmax.f32 %v241, %v245
  %v354 = vmax.f32 %v242, %v246
  %v355 = vmax.f32 %v243, %v247
  %v356 = vmax.f32 %v244, %v248
  %v357 = vmax.f32 %v245, %v249
  %v358 = vmax.f32 %v246, %v250
  %v359 = vmax.f32 %v247, %v251
  %v360 = vmax.f32 %v248, %v252
  %v361 = vmax.f32 %v249, %v253
  %v362 = vmax.f32 %v250, %v254
  %v363 = vmax.f32 %v251, %v255
  %v364 = vmax.f32 %v252, %v256
  %v365 = vmax.f32 %v253, %v257
  %v366 = vmax.f32 %v254, %v258
  %v367 = vmax.f32 %v255, %v259
  %v368 = vmax.f32 %v256, %v260
  %v369 = vmax.f32 %v257, %v261
  %v370 = vmax.f32 %v258, %v262
  %v371 = vmax.f32 %v259, %v263
  %v372 = vmax.f32 %v260, %v264
  %v373 = vmax.f32 %v261, %v265
  %v374 = vmax.f32 %v262, %v266
  %v375 = vmax.f32 %v263, %v267
  %v376 = vmax.f32 %v264, %v268
  %v377 = vmax.f32 %v265, %v269
  %v378 = vmax.f32 %v266, %v270
  %v379 = vmax.f32 %v267, %v271
  %v380 = vmax.f32 %v268, %v272
  %v381 = vmax.f32 %v269, %v273
  %v382 = vmax.f32 %v270, %v274
  %v383 = vmax.f32 %v271, %v275
  %v384 = vmax.f32 %v272, %v276
  %v385 = vmax.f32 %v273, %v277
  %v386 = vmax.f32 %v274, %v278
  %v387 = vmax.f32 %v275, %v279
  %v388 = vmax.f32 %v276, %v280
  %v389 = vmax.f32 %v277, %v281
  %v390 = vmax.f32 %v278, %v282
  %v391 = vmax.f32 %v283, %v291
  %v392 = vmax.f32 %v284, %v292
  %v393 = vmax.f32 %v285, %v293
  %v394 = vmax.f32 %v286, %v294
  %v395 = vmax.f32 %v287, %v295
  %v396 = vmax.f32 %v288, %v296
  %v397 = vmax.f32 %v289, %v297
  %v398 = vmax.f32 %v290, %v298
  %v399 = vmax.f32 %v291, %v299
  %v400 = vmax.f32 %v292, %v300
  %v401 = vmax.f32 %v293, %v301
  %v402 = vmax.f32 %v294, %v302
  %v403 = vmax.f32 %v295, %v303
  %v404 = vmax.f32 %v296, %v304
  %v405 = vmax.f32 %v297, %v305
  %v406 = vmax.f32 %v298, %v306
  %v407 = vmax.f32 %v299, %v307
  %v408 = vmax.f32 %v300, %v308
  %v409 = vmax.f32 %v301, %v309
  %v410 = vmax.f32 %v302, %v310
  %v411 = vmax.f32 %v303, %v311
  %v412 = vmax.f32 %v304, %v312
  %v413 = vmax.f32 %v305, %v313
  %v414 = vmax.f32 %v306, %v314
  %v415 = vmax.f32 %v307, %v315
  %v416 = vmax.f32 %v308, %v316
  %v417 = vmax.f32 %v309, %v317
  %v418 = vmax.f32 %v310, %v318
  %v419 = vmax.f32 %v311, %v319
  %v420 = vmax.f32 %v312, %v320
  %v421 = vmax.f32 %v313, %v321
  %v422 = vmax.f32 %v314, %v322
  %v423 = vmax.f32 %v315, %v323
  %v424 = vmax.f32 %v316, %v324
  %v425 = vmax.f32 %v317, %v325
  %v426 = vmax.f32 %v318, %v326
  %v427 = vmax.f32 %v319, %v327
  %v428 = vmax.f32 %v320, %v328
  %v429 = vmax.f32 %v321, %v329
  %v430 = vmax.f32 %v322, %v330
  %v431 = vmax.f32 %v323, %v331
  %v432 = vmax.f32 %v324, %v332
  %v433 = vmax.f32 %v325, %v333
  %v434 = vmax.f32 %v326, %v334
  %v435 = vmax.f32 %v327, %v335
  %v436 = vmax.f32 %v328, %v336
  %v437 = vmax.f32 %v329, %v337
  %v438 = vmax.f32 %v330, %v338
  %v439 = vmax.f32 %v331, %v339
  %v440 = vmax.f32 %v332, %v340
  %v441 = vmax.f32 %v333, %v341
  %v442 = vmax.f32 %v334, %v342
  %v443 = vmax.f32 %v335, %v343
  %v444 = vmax.f32 %v336, %v344
  %v445 = vmax.f32 %v337, %v345
  %v446 = vmax.f32 %v338, %v346
  %v447 = vmax.f32 %v339, %v347
  %v448 = vmax.f32 %v340, %v348
  %v449 = vmax.f32 %v341, %v349
  %v450 = vmax.f32 %v342, %v350
  %v451 = vmax.f32 %v343, %v351
  %v452 = vmax.f32 %v344, %v352
  %v453 = vmax.f32 %v345, %v353
  %v454 = vmax.f32 %v346, %v354
  %v455 = vmax.f32 %v347, %v355
  %v456 = vmax.f32 %v348, %v356
  %v457 = vmax.f32 %v349, %v357
  %v458 = vmax.f32 %v350, %v358
  %v459 = vmax.f32 %v351, %v359
  %v460 = vmax.f32 %v352, %v360
  %v461 = vmax.f32 %v353, %v361
  %v462 = vmax.f32 %v354, %v362
  %v463 = vmax.f32 %v355, %v363
  %v464 = vmax.f32 %v356, %v364
  %v465 = vmax.f32 %v357, %v365
  %v466 = vmax.f32 %v358, %v366
  %v467 = vmax.f32 %v359, %v367
  %v468 = vmax.f32 %v360, %v368
  %v469 = vmax.f32 %v361, %v369
  %v470 = vmax.f32 %v362, %v370
  %v471 = vmax.f32 %v363, %v371
  %v472 = vmax.f32 %v364, %v372
  %v473 = vmax.f32 %v365, %v373
  %v474 = vmax.f32 %v366, %v374
  %v475 = vmax.f32 %v367, %v375
  %v476 = vmax.f32 %v368, %v376
  %v477 = vmax.f32 %v369, %v377
  %v478 = vmax.f32 %v370, %v378
  %v479 = vmax.f32 %v371, %v379
  %v480 = vmax.f32 %v372, %v380
  %v481 = vmax.f32 %v373, %v381
  %v482 = vmax.f32 %v374, %v382
  %v483 = vmax.f32 %v375, %v383
  %v484 = vmax.f32 %v376, %v384
  %v485 = vmax.f32 %v377, %v385
  %v486 = vmax.f32 %v378, %v386
  %v487 = vmax.f32 %v379, %v387
  %v488 = vmax.f32 %v380, %v388
  %v489 = vmax.f32 %v381, %v389
  %v490 = vmax.f32 %v382, %v390
  %v491 = vmax.f32 %v391, %v407
  %v492 = vmax.f32 %v392, %v408
  %v493 = vmax.f32 %v393, %v409
  %v494 = vmax.f32 %v394, %v410
  %v495 = vmax.f32 %v395, %v411
  %v496 = vmax.f32 %v396, %v412
  %v497 = vmax.f32 %v397, %v413
  %v498 = vmax.f32 %v398, %v414
  %v499 = vmax.f32 %v399, %v415
  %v500 = vmax.f32 %v400, %v416
  %v501 = vmax.f32 %v401, %v417
  %v502 = vmax.f32 %v402, %v418
  %v503 = vmax.f32 %v403, %v419
  %v504 = vmax.f32 %v404, %v420
  %v505 = vmax.f32 %v405, %v421
  %v506 = vmax.f32 %v406, %v422
  %v507 = vmax.f32 %v407, %v423
  %v508 = vmax.f32 %v408, %v424
  %v509 = vmax.f32 %v409, %v425
  %v510 = vmax.f32 %v410, %v426
  %v511 = vmax.f32 %v411, %v427
  %v512 = vmax.f32 %v412, %v428
  %v513 = vmax.f32 %v413, %v429
  %v514 = vmax.f32 %v414, %v430
  %v515 = vmax.f32 %v415, %v431
  %v516 = vmax.f32 %v416, %v432
  %v517 = vmax.f32 %v417, %v433
  %v518 = vmax.f32 %v418, %v434
  %v519 = vmax.f32 %v419, %v435
  %v520 = vmax.f32 %v420, %v436
  %v521 = vmax.f32 %v421, %v437
  %v522 = vmax.f32 %v422, %v438
  %v523 = vmax.f32 %v423, %v439
  %v524 = vmax.f32 %v424, %v440
  %v525 = vmax.f32 %v425, %v441
  %v526 = vmax.f32 %v426, %v442
  %v527 = vmax.f32 %v427, %v443
  %v528 = vmax.f32 %v428, %v444
  %v529 = vmax.f32 %v429, %v445
  %v530 = vmax.f32 %v430, %v446
  %v531 = vmax.f32 %v431, %v447
  %v532 = vmax.f32 %v432, %v448
  %v533 = vmax.f32 %v433, %v449
  %v534 = vmax.f32 %v434, %v450
  %v535 = vmax.f32 %v435, %v451
  %v536 = vmax.f32 %v436, %v452
  %v537 = vmax.f32 %v437, %v453
  %v538 = vmax.f32 %v438, %v454
  %v539 = vmax.f32 %v439, %v455
  %v540 = vmax.f32 %v440, %v456
  %v541 = vmax.f32 %v441, %v457
  %v542 = vmax.f32 %v442, %v458
  %v543 = vmax.f32 %v443, %v459
  %v544 = vmax.f32 %v444, %v460
  %v545 = vmax.f32 %v445, %v461
  %v546 = vmax.f32 %v446, %v462
  %v547 = vmax.f32 %v447, %v463
  %v548 = vmax.f32 %v448, %v464
  %v549 = vmax.f32 %v449, %v465
  %v550 = vmax.f32 %v450, %v466
  %v551 = vmax.f32 %v451, %v467
  %v552 = vmax.f32 %v452, %v468
  %v553 = vmax.f32 %v453, %v469
  %v554 = vmax.f32 %v454, %v470
  %v555 = vmax.f32 %v455, %v471
  %v556 = vmax.f32 %v456, %v472
  %v557 = vmax.f32 %v457, %v473
  %v558 = vmax.f32 %v458, %v474
  %v559 = vmax.f32 %v459, %v475
  %v560 = vmax.f32 %v460, %v476
  %v561 = vmax.f32 %v461, %v477
  %v562 = vmax.f32 %v462, %v478
  %v563 = vmax.f32 %v463, %v479
  %v564 = vmax.f32 %v464, %v480
  %v565 = vmax.f32 %v465, %v481
  %v566 = vmax.f32 %v466, %v482
  %v567 = vmax.f32 %v467, %v483
  %v568 = vmax.f32 %v468, %v484
  %v569 = vmax.f32 %v469, %v485
  %v570 = vmax.f32 %v470, %v486
  %v571 = vmax.f32 %v471, %v487
  %v572 = vmax.f32 %v472, %v488
  %v573 = vmax.f32 %v473, %v489
  %v574 = vmax.f32 %v474, %v490
  %v575 = vmax.f32 %v407, %v411
  %v576 = vmax.f32 %v408, %v412
  %v577 = vmax.f32 %v409, %v413
  %v578 = vmax.f32 %v410, %v414
  %v579 = vmax.f32 %v411, %v415
  %v580 = vmax.f32 %v412, %v416
  %v581 = vmax.f32 %v413, %v417
  %v582 = vmax.f32 %v414, %v418
  %v583 = vmax.f32 %v415, %v419
  %v584 = vmax.f32 %v416, %v420
  %v585 = vmax.f32 %v417, %v421
  %v586 = vmax.f32 %v418, %v422
  %v587 = vmax.f32 %v419, %v423
  %v588 = vmax.f32 %v420, %v424
  %v589 = vmax.f32 %v421, %v425
  %v590 = vmax.f32 %v422, %v426
  %v591 = vmax.f32 %v423, %v427
  %v592 = vmax.f32 %v424, %v428
  %v593 = vmax.f32 %v425, %v429
  %v594 = vmax.f32 %v426, %v430
  %v595 = vmax.f32 %v427, %v431
  %v596 = vmax.f32 %v428, %v432
  %v597 = vmax.f32 %v429, %v433
  %v598 = vmax.f32 %v430, %v434
  %v599 = vmax.f32 %v431, %v435
  %v600 = vmax.f32 %v432, %v436
  %v601 = vmax.f32 %v433, %v437
  %v602 = vmax.f32 %v434, %v438
  %v603 = vmax.f32 %v435, %v439
  %v604 = vmax.f32 %v436, %v440
  %v605 = vmax.f32 %v437, %v441
  %v606 = vmax.f32 %v438, %v442
  %v607 = vmax.f32 %v439, %v443
  %v608 = vmax.f32 %v440, %v444
  %v609 = vmax.f32 %v441, %v445
  %v610 = vmax.f32 %v442, %v446
  %v611 = vmax.f32 %v443, %v447
  %v612 = vmax.f32 %v444, %v448
  %v613 = vmax.f32 %v445, %v449
  %v614 = vmax.f32 %v446, %v450
  %v615 = vmax.f32 %v447, %v451
  %v616 = vmax.f32 %v448, %v452
  %v617 = vmax.f32 %v449, %v453
  %v618 = vmax.f32 %v450, %v454
  %v619 = vmax.f32 %v451, %v455
  %v620 = vmax.f32 %v452, %v456
  %v621 = vmax.f32 %v453, %v457
  %v622 = vmax.f32 %v454, %v458
  %v623 = vmax.f32 %v455, %v459
  %v624 = vmax.f32 %v456, %v460
  %v625 = vmax.f32 %v457, %v461
  %v626 = vmax.f32 %v458, %v462
  %v627 = vmax.f32 %v459, %v463
  %v628 = vmax.f32 %v460, %v464
  %v629 = vmax.f32 %v461, %v465
  %v630 = vmax.f32 %v462, %v466
  %v631 = vmax.f32 %v463, %v467
  %v632 = vmax.f32 %v464, %v468
  %v633 = vmax.f32 %v465, %v469
  %v634 = vmax.f32 %v466, %v470
  %v635 = vmax.f32 %v467, %v471
  %v636 = vmax.f32 %v468, %v472
  %v637 = vmax.f32 %v469, %v473
  %v638 = vmax.f32 %v470, %v474
  %v639 = vmax.f32 %v499, %v503
  %v640 = vmax.f32 %v500, %v504
  %v641 = vmax.f32 %v501, %v505
  %v642 = vmax.f32 %v502, %v506
  %v643 = vmax.f32 %v503, %v507
  %v644 = vmax.f32 %v504, %v508
  %v645 = vmax.f32 %v505, %v509
  %v646 = vmax.f32 %v506, %v510
  %v647 = vmax.f32 %v507, %v511
  %v648 = vmax.f32 %v508, %v512
  %v649 = vmax.f32 %v509, %v513
  %v650 = vmax.f32 %v510, %v514
  %v651 = vmax.f32 %v511, %v515
  %v652 = vmax.f32 %v512, %v516
  %v653 = vmax.f32 %v513, %v517
  %v654 = vmax.f32 %v514, %v518
  %v655 = vmax.f32 %v515, %v519
  %v656 = vmax.f32 %v516, %v520
  %v657 = vmax.f32 %v517, %v521
  %v658 = vmax.f32 %v518, %v522
  %v659 = vmax.f32 %v519, %v523
  %v660 = vmax.f32 %v520, %v524
  %v661 = vmax.f32 %v521, %v525
  %v662 = vmax.f32 %v522, %v526
  %v663 = vmax.f32 %v523, %v527
  %v664 = vmax.f32 %v524, %v528
  %v665 = vmax.f32 %v525, %v529
  %v666 = vmax.f32 %v526, %v530
  %v667 = vmax.f32 %v527, %v531
  %v668 = vmax.f32 %v528, %v532
  %v669 = vmax.f32 %v529, %v533
  %v670 = vmax.f32 %v530, %v534
  %v671 = vmax.f32 %v531, %v535
  %v672 = vmax.f32 %v532, %v536
  %v673 = vmax.f32 %v533, %v537
  %v674 = vmax.f32 %v534, %v538
  %v675 = vmax.f32 %v535, %v539
  %v676 = vmax.f32 %v536, %v540
  %v677 = vmax.f32 %v537, %v541
  %v678 = vmax.f32 %v538, %v542
  %v679 = vmax.f32 %v539, %v543
  %v680 = vmax.f32 %v540, %v544
  %v681 = vmax.f32 %v541, %v545
  %v682 = vmax.f32 %v542, %v546
  %v683 = vmax.f32 %v543, %v547
  %v684 = vmax.f32 %v544, %v548
  %v685 = vmax.f32 %v545, %v549
  %v686 = vmax.f32 %v546, %v550
  %v687 = vmax.f32 %v547, %v551
  %v688 = vmax.f32 %v548, %v552
  %v689 = vmax.f32 %v549, %v553
  %v690 = vmax.f32 %v550, %v554
  %v691 = vmax.f32 %v551, %v555
  %v692 = vmax.f32 %v552, %v556
  %v693 = vmax.f32 %v553, %v557
  %v694 = vmax.f32 %v554, %v558
  %v695 = vmax.f32 %v555, %v559
  %v696 = vmax.f32 %v556, %v560
  %v697 = vmax.f32 %v557, %v561
  %v698 = vmax.f32 %v558, %v562
  %v699 = vmax.f32 %v559, %v563
  %v700 = vmax.f32 %v560, %v564
  %v701 = vmax.f32 %v561, %v565
  %v702 = vmax.f32 %v562, %v566
  %v703 = vmax.f32 %v491, %v511
  %v704 = vmax.f32 %v492, %v512
  %v705 = vmax.f32 %v493, %v513
  %v706 = vmax.f32 %v494, %v514
  %v707 = vmax.f32 %v495, %v515
  %v708 = vmax.f32 %v496, %v516
  %v709 = vmax.f32 %v497, %v517
  %v710 = vmax.f32 %v498, %v518
  %v711 = vmax.f32 %v499, %v519
  %v712 = vmax.f32 %v500, %v520
  %v713 = vmax.f32 %v501, %v521
  %v714 = vmax.f32 %v502, %v522
  %v715 = vmax.f32 %v503, %v523
  %v716 = vmax.f32 %v504, %v524
  %v717 = vmax.f32 %v505, %v525
  %v718 = vmax.f32 %v506, %v526
  %v719 = vmax.f32 %v507, %v527
  %v720 = vmax.f32 %v508, %v528
  %v721 = vmax.f32 %v509, %v529
  %v722 = vmax.f32 %v510, %v530
  %v723 = vmax.f32 %v511, %v531
  %v724 = vmax.f32 %v512, %v532
  %v725 = vmax.f32 %v513, %v533
  %v726 = vmax.f32 %v514, %v534
  %v727 = vmax.f32 %v515, %v535
  %v728 = vmax.f32 %v516, %v536
  %v729 = vmax.f32 %v517, %v537
  %v730 = vmax.f32 %v518, %v538
  %v731 = vmax.f32 %v519, %v539
  %v732 = vmax.f32 %v520, %v540
  %v733 = vmax.f32 %v521, %v541
  %v734 = vmax.f32 %v522, %v542
  %v735 = vmax.f32 %v523, %v543
  %v736 = vmax.f32 %v524, %v544
  %v737 = vmax.f32 %v525, %v545
  %v738 = vmax.f32 %v526, %v546
  %v739 = vmax.f32 %v527, %v547
  %v740 = vmax.f32 %v528, %v548
  %v741 = vmax.f32 %v529, %v549
  %v742 = vmax.f32 %v530, %v550
  %v743 = vmax.f32 %v531, %v551
  %v744 = vmax.f32 %v532, %v552
  %v745 = vmax.f32 %v533, %v553
  %v746 = vmax.f32 %v534, %v554
  %v747 = vmax.f32 %v535, %v555
  %v748 = vmax.f32 %v536, %v556
  %v749 = vmax.f32 %v537, %v557
  %v750 = vmax.f32 %v538, %v558
  %v751 = vmax.f32 %v539, %v559
  %v752 = vmax.f32 %v540, %v560
  %v753 = vmax.f32 %v541, %v561
  %v754 = vmax.f32 %v542, %v562
  %v755 = vmax.f32 %v543, %v563
  %v756 = vmax.f32 %v544, %v564
  %v757 = vmax.f32 %v545, %v565
  %v758 = vmax.f32 %v546, %v566
  %v759 = vmax.f32 %v547, %v567
  %v760 = vmax.f32 %v548, %v568
  %v761 = vmax.f32 %v549, %v569
  %v762 = vmax.f32 %v550, %v570
  %v763 = vmax.f32 %v551, %v571
  %v764 = vmax.f32 %v552, %v572
  %v765 = vmax.f32 %v553, %v573
  %v766 = vmax.f32 %v554, %v574
  %vm831 = vcmask 1046528
  %v832 = vrot.slane %v575, 1
  %v833 = vrot.slane %v576, 1
  %v834 = vsel %vm831, %v832, %v833
  %v835 = vrot.slane %v577, 1
  %v836 = vsel %vm831, %v833, %v835
  %v837 = vrot.slane %v578, 1
  %v838 = vsel %vm831, %v835, %v837
  %v839 = vrot.slane %v579, 1
  %v840 = vrot.slane %v580, 1
  %v841 = vsel %vm831, %v839, %v840
  %v842 = vrot.slane %v581, 1
  %v843 = vsel %vm831, %v840, %v842
  %v844 = vrot.slane %v582, 1
  %v845 = vsel %vm831, %v842, %v844
  %v846 = vrot.slane %v583, 1
  %v847 = vrot.slane %v584, 1
  %v848 = vsel %vm831, %v846, %v847
  %v849 = vrot.slane %v585, 1
  %v850 = vsel %vm831, %v847, %v849
  %v851 = vrot.slane %v586, 1
  %v852 = vsel %vm831, %v849, %v851
  %v853 = vrot.slane %v587, 1
  %v854 = vrot.slane %v588, 1
  %v855 = vsel %vm831, %v853, %v854
  %v856 = vrot.slane %v589, 1
  %v857 = vsel %vm831, %v854, %v856
  %v858 = vrot.slane %v590, 1
  %v859 = vsel %vm831, %v856, %v858
  %v860 = vrot.slane %v591, 1
  %v861 = vrot.slane %v592, 1
  %v862 = vsel %vm831, %v860, %v861
  %v863 = vrot.slane %v593, 1
  %v864 = vsel %vm831, %v861, %v863
  %v865 = vrot.slane %v594, 1
  %v866 = vsel %vm831, %v863, %v865
  %v867 = vrot.slane %v595, 1
  %v868 = vrot.slane %v596, 1
  %v869 = vsel %vm831, %v867, %v868
  %v870 = vrot.slane %v597, 1
  %v871 = vsel %vm831, %v868, %v870
  %v872 = vrot.slane %v598, 1
  %v873 = vsel %vm831, %v870, %v872
  %v874 = vrot.slane %v599, 1
  %v875 = vrot.slane %v600, 1
  %v876 = vsel %vm831, %v874, %v875
  %v877 = vrot.slane %v601, 1
  %v878 = vsel %vm831, %v875, %v877
  %v879 = vrot.slane %v602, 1
  %v880 = vsel %vm831, %v877, %v879
  %v881 = vrot.slane %v603, 1
  %v882 = vrot.slane %v604, 1
  %v883 = vsel %vm831, %v881, %v882
  %v884 = vrot.slane %v605, 1
  %v885 = vsel %vm831, %v882, %v884
  %v886 = vrot.slane %v606, 1
  %v887 = vsel %vm831, %v884, %v886
  %v888 = vrot.slane %v607, 1
  %v889 = vrot.slane %v608, 1
  %v890 = vsel %vm831, %v888, %v889
  %v891 = vrot.slane %v609, 1
  %v892 = vsel %vm831, %v889, %v891
  %v893 = vrot.slane %v610, 1
  %v894 = vsel %vm831, %v891, %v893
  %v895 = vrot.slane %v611, 1
  %v896 = vrot.slane %v612, 1
  %v897 = vsel %vm831, %v895, %v896
  %v898 = vrot.slane %v613, 1
  %v899 = vsel %vm831, %v896, %v898
  %v900 = vrot.slane %v614, 1
  %v901 = vsel %vm831, %v898, %v900
  %v902 = vrot.slane %v615, 1
  %v903 = vrot.slane %v616, 1
  %v904 = vsel %vm831, %v902, %v903
  %v905 = vrot.slane %v617, 1
  %v906 = vsel %vm831, %v903, %v905
  %v907 = vrot.slane %v618, 1
  %v908 = vsel %vm831, %v905, %v907
  %v909 = vrot.slane %v619, 1
  %v910 = vrot.slane %v620, 1
  %v911 = vsel %vm831, %v909, %v910
  %v912 = vrot.slane %v621, 1
  %v913 = vsel %vm831, %v910, %v912
  %v914 = vrot.slane %v622, 1
  %v915 = vsel %vm831, %v912, %v914
  %v916 = vrot.slane %v623, 1
  %v917 = vrot.slane %v624, 1
  %v918 = vsel %vm831, %v916, %v917
  %v919 = vrot.slane %v625, 1
  %v920 = vsel %vm831, %v917, %v919
  %v921 = vrot.slane %v626, 1
  %v922 = vsel %vm831, %v919, %v921
  %v923 = vrot.slane %v627, 1
  %v924 = vrot.slane %v628, 1
  %v925 = vsel %vm831, %v923, %v924
  %v926 = vrot.slane %v629, 1
  %v927 = vsel %vm831, %v924, %v926
  %v928 = vrot.slane %v630, 1
  %v929 = vsel %vm831, %v926, %v928
  %v930 = vrot.slane %v631, 1
  %v931 = vrot.slane %v632, 1
  %v932 = vsel %vm831, %v930, %v931
  %v933 = vrot.slane %v633, 1
  %v934 = vsel %vm831, %v931, %v933
  %v935 = vrot.slane %v634, 1
  %v936 = vsel %vm831, %v933, %v935
  %v937 = vrot.slane %v635, 1
  %v938 = vrot.slane %v636, 1
  %v939 = vsel %vm831, %v937, %v938
  %v940 = vrot.slane %v637, 1
  %v941 = vsel %vm831, %v938, %v940
  %v942 = vrot.slane %v638, 1
  %v943 = vsel %vm831, %v940, %v942
  %v1008 = vmax.f32 %v575, %v834
  %v1009 = vmax.f32 %v576, %v836
  %v1010 = vmax.f32 %v577, %v838
  %v1011 = vmax.f32 %v578, %v837
  %v1012 = vmax.f32 %v579, %v841
  %v1013 = vmax.f32 %v580, %v843
  %v1014 = vmax.f32 %v581, %v845
  %v1015 = vmax.f32 %v582, %v844
  %v1016 = vmax.f32 %v583, %v848
  %v1017 = vmax.f32 %v584, %v850
  %v1018 = vmax.f32 %v585, %v852
  %v1019 = vmax.f32 %v586, %v851
  %v1020 = vmax.f32 %v587, %v855
  %v1021 = vmax.f32 %v588, %v857
  %v1022 = vmax.f32 %v589, %v859
  %v1023 = vmax.f32 %v590, %v858
  %v1024 = vmax.f32 %v591, %v862
  %v1025 = vmax.f32 %v592, %v864
  %v1026 = vmax.f32 %v593, %v866
  %v1027 = vmax.f32 %v594, %v865
  %v1028 = vmax.f32 %v595, %v869
  %v1029 = vmax.f32 %v596, %v871
  %v1030 = vmax.f32 %v597, %v873
  %v1031 = vmax.f32 %v598, %v872
  %v1032 = vmax.f32 %v599, %v876
  %v1033 = vmax.f32 %v600, %v878
  %v1034 = vmax.f32 %v601, %v880
  %v1035 = vmax.f32 %v602, %v879
  %v1036 = vmax.f32 %v603, %v883
  %v1037 = vmax.f32 %v604, %v885
  %v1038 = vmax.f32 %v605, %v887
  %v1039 = vmax.f32 %v606, %v886
  %v1040 = vmax.f32 %v607, %v890
  %v1041 = vmax.f32 %v608, %v892
  %v1042 = vmax.f32 %v609, %v894
  %v1043 = vmax.f32 %v610, %v893
  %v1044 = vmax.f32 %v611, %v897
  %v1045 = vmax.f32 %v612, %v899
  %v1046 = vmax.f32 %v613, %v901
  %v1047 = vmax.f32 %v614, %v900
  %v1048 = vmax.f32 %v615, %v904
  %v1049 = vmax.f32 %v616, %v906
  %v1050 = vmax.f32 %v617, %v908
  %v1051 = vmax.f32 %v618, %v907
  %v1052 = vmax.f32 %v619, %v911
  %v1053 = vmax.f32 %v620, %v913
  %v1054 = vmax.f32 %v621, %v915
  %v1055 = vmax.f32 %v622, %v914
  %v1056 = vmax.f32 %v623, %v918
  %v1057 = vmax.f32 %v624, %v920
  %v1058 = vmax.f32 %v625, %v922
  %v1059 = vmax.f32 %v626, %v921
  %v1060 = vmax.f32 %v627, %v925
  %v1061 = vmax.f32 %v628, %v927
  %v1062 = vmax.f32 %v629, %v929
  %v1063 = vmax.f32 %v630, %v928
  %v1064 = vmax.f32 %v631, %v932
  %v1065 = vmax.f32 %v632, %v934
  %v1066 = vmax.f32 %v633, %v936
  %v1067 = vmax.f32 %v634, %v935
  %v1068 = vmax.f32 %v635, %v939
  %v1069 = vmax.f32 %v636, %v941
  %v1070 = vmax.f32 %v637, %v943
  %v1071 = vmax.f32 %v638, %v942
  %vm1136 = vcmask 1045504
  %v1137 = vrot.slane %v1008, 2
  %v1138 = vrot.slane %v1009, 2
  %v1139 = vsel %vm1136, %v1137, %v1138
  %v1140 = vrot.slane %v1010, 2
  %v1141 = vsel %vm1136, %v1138, %v1140
  %v1142 = vrot.slane %v1011, 2
  %v1143 = vsel %vm1136, %v1140, %v1142
  %v1144 = vrot.slane %v1012, 2
  %v1145 = vrot.slane %v1013, 2
  %v1146 = vsel %vm1136, %v1144, %v1145
  %v1147 = vrot.slane %v1014, 2
  %v1148 = vsel %vm1136, %v1145, %v1147
  %v1149 = vrot.slane %v1015, 2
  %v1150 = vsel %vm1136, %v1147, %v1149
  %v1151 = vrot.slane %v1016, 2
  %v1152 = vrot.slane %v1017, 2
  %v1153 = vsel %vm1136, %v1151, %v1152
  %v1154 = vrot.slane %v1018, 2
  %v1155 = vsel %vm1136, %v1152, %v1154
  %v1156 = vrot.slane %v1019, 2
  %v1157 = vsel %vm1136, %v1154, %v1156
  %v1158 = vrot.slane %v1020, 2
  %v1159 = vrot.slane %v1021, 2
  %v1160 = vsel %vm1136, %v1158, %v1159
  %v1161 = vrot.slane %v1022, 2
  %v1162 = vsel %vm1136, %v1159, %v1161
  %v1163 = vrot.slane %v1023, 2
  %v1164 = vsel %vm1136, %v1161, %v1163
  %v1165 = vrot.slane %v1024, 2
  %v1166 = vrot.slane %v1025, 2
  %v1167 = vsel %vm1136, %v1165, %v1166
  %v1168 = vrot.slane %v1026, 2
  %v1169 = vsel %vm1136, %v1166, %v1168
  %v1170 = vrot.slane %v1027, 2
  %v1171 = vsel %vm1136, %v1168, %v1170
  %v1172 = vrot.slane %v1028, 2
  %v1173 = vrot.slane %v1029, 2
  %v1174 = vsel %vm1136, %v1172, %v1173
  %v1175 = vrot.slane %v1030, 2
  %v1176 = vsel %vm1136, %v1173, %v1175
  %v1177 = vrot.slane %v1031, 2
  %v1178 = vsel %vm1136, %v1175, %v1177
  %v1179 = vrot.slane %v1032, 2
  %v1180 = vrot.slane %v1033, 2
  %v1181 = vsel %vm1136, %v1179, %v1180
  %v1182 = vrot.slane %v1034, 2
  %v1183 = vsel %vm1136, %v1180, %v1182
  %v1184 = vrot.slane %v1035, 2
  %v1185 = vsel %vm1136, %v1182, %v1184
  %v1186 = vrot.slane %v1036, 2
  %v1187 = vrot.slane %v1037, 2
  %v1188 = vsel %vm1136, %v1186, %v1187
  %v1189 = vrot.slane %v1038, 2
  %v1190 = vsel %vm1136, %v1187, %v1189
  %v1191 = vrot.slane %v1039, 2
  %v1192 = vsel %vm1136, %v1189, %v1191
  %v1193 = vrot.slane %v1040, 2
  %v1194 = vrot.slane %v1041, 2
  %v1195 = vsel %vm1136, %v1193, %v1194
  %v1196 = vrot.slane %v1042, 2
  %v1197 = vsel %vm1136, %v1194, %v1196
  %v1198 = vrot.slane %v1043, 2
  %v1199 = vsel %vm1136, %v1196, %v1198
  %v1200 = vrot.slane %v1044, 2
  %v1201 = vrot.slane %v1045, 2
  %v1202 = vsel %vm1136, %v1200, %v1201
  %v1203 = vrot.slane %v1046, 2
  %v1204 = vsel %vm1136, %v1201, %v1203
  %v1205 = vrot.slane %v1047, 2
  %v1206 = vsel %vm1136, %v1203, %v1205
  %v1207 = vrot.slane %v1048, 2
  %v1208 = vrot.slane %v1049, 2
  %v1209 = vsel %vm1136, %v1207, %v1208
  %v1210 = vrot.slane %v1050, 2
  %v1211 = vsel %vm1136, %v1208, %v1210
  %v1212 = vrot.slane %v1051, 2
  %v1213 = vsel %vm1136, %v1210, %v1212
  %v1214 = vrot.slane %v1052, 2
  %v1215 = vrot.slane %v1053, 2
  %v1216 = vsel %vm1136, %v1214, %v1215
  %v1217 = vrot.slane %v1054, 2
  %v1218 = vsel %vm1136, %v1215, %v1217
  %v1219 = vrot.slane %v1055, 2
  %v1220 = vsel %vm1136, %v1217, %v1219
  %v1221 = vrot.slane %v1056, 2
  %v1222 = vrot.slane %v1057, 2
  %v1223 = vsel %vm1136, %v1221, %v1222
  %v1224 = vrot.slane %v1058, 2
  %v1225 = vsel %vm1136, %v1222, %v1224
  %v1226 = vrot.slane %v1059, 2
  %v1227 = vsel %vm1136, %v1224, %v1226
  %v1228 = vrot.slane %v1060, 2
  %v1229 = vrot.slane %v1061, 2
  %v1230 = vsel %vm1136, %v1228, %v1229
  %v1231 = vrot.slane %v1062, 2
  %v1232 = vsel %vm1136, %v1229, %v1231
  %v1233 = vrot.slane %v1063, 2
  %v1234 = vsel %vm1136, %v1231, %v1233
  %v1235 = vrot.slane %v1064, 2
  %v1236 = vrot.slane %v1065, 2
  %v1237 = vsel %vm1136, %v1235, %v1236
  %v1238 = vrot.slane %v1066, 2
  %v1239 = vsel %vm1136, %v1236, %v1238
  %v1240 = vrot.slane %v1067, 2
  %v1241 = vsel %vm1136, %v1238, %v1240
  %v1242 = vrot.slane %v1068, 2
  %v1243 = vrot.slane %v1069, 2
  %v1244 = vsel %vm1136, %v1242, %v1243
  %v1245 = vrot.slane %v1070, 2
  %v1246 = vsel %vm1136, %v1243, %v1245
  %v1247 = vrot.slane %v1071, 2
  %v1248 = vsel %vm1136, %v1245, %v1247
  %v1297 = vmax.f32 %v1008, %v1139
  %v1298 = vmax.f32 %v1009, %v1141
  %v1299 = vmax.f32 %v1010, %v1143
  %v1300 = vmax.f32 %v1012, %v1146
  %v1301 = vmax.f32 %v1013, %v1148
  %v1302 = vmax.f32 %v1014, %v1150
  %v1303 = vmax.f32 %v1016, %v1153
  %v1304 = vmax.f32 %v1017, %v1155
  %v1305 = vmax.f32 %v1018, %v1157
  %v1306 = vmax.f32 %v1020, %v1160
  %v1307 = vmax.f32 %v1021, %v1162
  %v1308 = vmax.f32 %v1022, %v1164
  %v1309 = vmax.f32 %v1024, %v1167
  %v1310 = vmax.f32 %v1025, %v1169
  %v1311 = vmax.f32 %v1026, %v1171
  %v1312 = vmax.f32 %v1028, %v1174
  %v1313 = vmax.f32 %v1029, %v1176
  %v1314 = vmax.f32 %v1030, %v1178
  %v1315 = vmax.f32 %v1032, %v1181
  %v1316 = vmax.f32 %v1033, %v1183
  %v1317 = vmax.f32 %v1034, %v1185
  %v1318 = vmax.f32 %v1036, %v1188
  %v1319 = vmax.f32 %v1037, %v1190
  %v1320 = vmax.f32 %v1038, %v1192
  %v1321 = vmax.f32 %v1040, %v1195
  %v1322 = vmax.f32 %v1041, %v1197
  %v1323 = vmax.f32 %v1042, %v1199
  %v1324 = vmax.f32 %v1044, %v1202
  %v1325 = vmax.f32 %v1045, %v1204
  %v1326 = vmax.f32 %v1046, %v1206
  %v1327 = vmax.f32 %v1048, %v1209
  %v1328 = vmax.f32 %v1049, %v1211
  %v1329 = vmax.f32 %v1050, %v1213
  %v1330 = vmax.f32 %v1052, %v1216
  %v1331 = vmax.f32 %v1053, %v1218
  %v1332 = vmax.f32 %v1054, %v1220
  %v1333 = vmax.f32 %v1056, %v1223
  %v1334 = vmax.f32 %v1057, %v1225
  %v1335 = vmax.f32 %v1058, %v1227
  %v1336 = vmax.f32 %v1060, %v1230
  %v1337 = vmax.f32 %v1061, %v1232
  %v1338 = vmax.f32 %v1062, %v1234
  %v1339 = vmax.f32 %v1064, %v1237
  %v1340 = vmax.f32 %v1065, %v1239
  %v1341 = vmax.f32 %v1066, %v1241
  %v1342 = vmax.f32 %v1068, %v1244
  %v1343 = vmax.f32 %v1069, %v1246
  %v1344 = vmax.f32 %v1070, %v1248
  %v1393 = vrot.slane %v1297, 1
  %v1394 = vrot.slane %v1298, 1
  %v1395 = vsel %vm831, %v1393, %v1394
  %v1396 = vrot.slane %v1299, 1
  %v1397 = vsel %vm831, %v1394, %v1396
  %v1398 = vrot.slane %v1300, 1
  %v1399 = vrot.slane %v1301, 1
  %v1400 = vsel %vm831, %v1398, %v1399
  %v1401 = vrot.slane %v1302, 1
  %v1402 = vsel %vm831, %v1399, %v1401
  %v1403 = vrot.slane %v1303, 1
  %v1404 = vrot.slane %v1304, 1
  %v1405 = vsel %vm831, %v1403, %v1404
  %v1406 = vrot.slane %v1305, 1
  %v1407 = vsel %vm831, %v1404, %v1406
  %v1408 = vrot.slane %v1306, 1
  %v1409 = vrot.slane %v1307, 1
  %v1410 = vsel %vm831, %v1408, %v1409
  %v1411 = vrot.slane %v1308, 1
  %v1412 = vsel %vm831, %v1409, %v1411
  %v1413 = vrot.slane %v1309, 1
  %v1414 = vrot.slane %v1310, 1
  %v1415 = vsel %vm831, %v1413, %v1414
  %v1416 = vrot.slane %v1311, 1
  %v1417 = vsel %vm831, %v1414, %v1416
  %v1418 = vrot.slane %v1312, 1
  %v1419 = vrot.slane %v1313, 1
  %v1420 = vsel %vm831, %v1418, %v1419
  %v1421 = vrot.slane %v1314, 1
  %v1422 = vsel %vm831, %v1419, %v1421
  %v1423 = vrot.slane %v1315, 1
  %v1424 = vrot.slane %v1316, 1
  %v1425 = vsel %vm831, %v1423, %v1424
  %v1426 = vrot.slane %v1317, 1
  %v1427 = vsel %vm831, %v1424, %v1426
  %v1428 = vrot.slane %v1318, 1
  %v1429 = vrot.slane %v1319, 1
  %v1430 = vsel %vm831, %v1428, %v1429
  %v1431 = vrot.slane %v1320, 1
  %v1432 = vsel %vm831, %v1429, %v1431
  %v1433 = vrot.slane %v1321, 1
  %v1434 = vrot.slane %v1322, 1
  %v1435 = vsel %vm831, %v1433, %v1434
  %v1436 = vrot.slane %v1323, 1
  %v1437 = vsel %vm831, %v1434, %v1436
  %v1438 = vrot.slane %v1324, 1
  %v1439 = vrot.slane %v1325, 1
  %v1440 = vsel %vm831, %v1438, %v1439
  %v1441 = vrot.slane %v1326, 1
  %v1442 = vsel %vm831, %v1439, %v1441
  %v1443 = vrot.slane %v1327, 1
  %v1444 = vrot.slane %v1328, 1
  %v1445 = vsel %vm831, %v1443, %v1444
  %v1446 = vrot.slane %v1329, 1
  %v1447 = vsel %vm831, %v1444, %v1446
  %v1448 = vrot.slane %v1330, 1
  %v1449 = vrot.slane %v1331, 1
  %v1450 = vsel %vm831, %v1448, %v1449
  %v1451 = vrot.slane %v1332, 1
  %v1452 = vsel %vm831, %v1449, %v1451
  %v1453 = vrot.slane %v1333, 1
  %v1454 = vrot.slane %v1334, 1
  %v1455 = vsel %vm831, %v1453, %v1454
  %v1456 = vrot.slane %v1335, 1
  %v1457 = vsel %vm831, %v1454, %v1456
  %v1458 = vrot.slane %v1336, 1
  %v1459 = vrot.slane %v1337, 1
  %v1460 = vsel %vm831, %v1458, %v1459
  %v1461 = vrot.slane %v1338, 1
  %v1462 = vsel %vm831, %v1459, %v1461
  %v1463 = vrot.slane %v1339, 1
  %v1464 = vrot.slane %v1340, 1
  %v1465 = vsel %vm831, %v1463, %v1464
  %v1466 = vrot.slane %v1341, 1
  %v1467 = vsel %vm831, %v1464, %v1466
  %v1468 = vrot.slane %v1342, 1
  %v1469 = vrot.slane %v1343, 1
  %v1470 = vsel %vm831, %v1468, %v1469
  %v1471 = vrot.slane %v1344, 1
  %v1472 = vsel %vm831, %v1469, %v1471
  %v1521 = vmax.f32 %v1297, %v1395
  %v1522 = vmax.f32 %v1298, %v1397
  %v1523 = vmax.f32 %v1299, %v1396
  %v1524 = vmax.f32 %v1300, %v1400
  %v1525 = vmax.f32 %v1301, %v1402
  %v1526 = vmax.f32 %v1302, %v1401
  %v1527 = vmax.f32 %v1303, %v1405
  %v1528 = vmax.f32 %v1304, %v1407
  %v1529 = vmax.f32 %v1305, %v1406
  %v1530 = vmax.f32 %v1306, %v1410
  %v1531 = vmax.f32 %v1307, %v1412
  %v1532 = vmax.f32 %v1308, %v1411
  %v1533 = vmax.f32 %v1309, %v1415
  %v1534 = vmax.f32 %v1310, %v1417
  %v1535 = vmax.f32 %v1311, %v1416
  %v1536 = vmax.f32 %v1312, %v1420
  %v1537 = vmax.f32 %v1313, %v1422
  %v1538 = vmax.f32 %v1314, %v1421
  %v1539 = vmax.f32 %v1315, %v1425
  %v1540 = vmax.f32 %v1316, %v1427
  %v1541 = vmax.f32 %v1317, %v1426
  %v1542 = vmax.f32 %v1318, %v1430
  %v1543 = vmax.f32 %v1319, %v1432
  %v1544 = vmax.f32 %v1320, %v1431
  %v1545 = vmax.f32 %v1321, %v1435
  %v1546 = vmax.f32 %v1322, %v1437
  %v1547 = vmax.f32 %v1323, %v1436
  %v1548 = vmax.f32 %v1324, %v1440
  %v1549 = vmax.f32 %v1325, %v1442
  %v1550 = vmax.f32 %v1326, %v1441
  %v1551 = vmax.f32 %v1327, %v1445
  %v1552 = vmax.f32 %v1328, %v1447
  %v1553 = vmax.f32 %v1329, %v1446
  %v1554 = vmax.f32 %v1330, %v1450
  %v1555 = vmax.f32 %v1331, %v1452
  %v1556 = vmax.f32 %v1332, %v1451
  %v1557 = vmax.f32 %v1333, %v1455
  %v1558 = vmax.f32 %v1334, %v1457
  %v1559 = vmax.f32 %v1335, %v1456
  %v1560 = vmax.f32 %v1336, %v1460
  %v1561 = vmax.f32 %v1337, %v1462
  %v1562 = vmax.f32 %v1338, %v1461
  %v1563 = vmax.f32 %v1339, %v1465
  %v1564 = vmax.f32 %v1340, %v1467
  %v1565 = vmax.f32 %v1341, %v1466
  %v1566 = vmax.f32 %v1342, %v1470
  %v1567 = vmax.f32 %v1343, %v1472
  %v1568 = vmax.f32 %v1344, %v1471
  %vm1569 = vcmask 64518
  %1570 = vst.msk [vmem:[%s1 - $0x6] sm:$0xc0] %vm1569, %v1521
  %1571 = vst.msk [vmem:[%s1 + $0x2] sm:$0xff] %vm40, %v1522
  %vm1572 = vcmask 62464
  %1573 = vst.msk [vmem:[%s1 + $0xa] sm:$0x3f] %vm1572, %v1523
  %1574 = vst.msk [vmem:[%s1 + $0xa] sm:$0xc0] %vm1569, %v1524
  %1575 = vst.msk [vmem:[%s1 + $0x12] sm:$0xff] %vm40, %v1525
  %1576 = vst.msk [vmem:[%s1 + $0x1a] sm:$0x3f] %vm1572, %v1526
  %1577 = vst.msk [vmem:[%s1 + $0x1a] sm:$0xc0] %vm1569, %v1527
  %1578 = vst.msk [vmem:[%s1 + $0x22] sm:$0xff] %vm40, %v1528
  %1579 = vst.msk [vmem:[%s1 + $0x2a] sm:$0x3f] %vm1572, %v1529
  %1580 = vst.msk [vmem:[%s1 + $0x2a] sm:$0xc0] %vm1569, %v1530
  %1581 = vst.msk [vmem:[%s1 + $0x32] sm:$0xff] %vm40, %v1531
  %1582 = vst.msk [vmem:[%s1 + $0x3a] sm:$0x3f] %vm1572, %v1532
  %1583 = vst.msk [vmem:[%s1 + $0x3a] sm:$0xc0] %vm1569, %v1533
  %1584 = vst.msk [vmem:[%s1 + $0x42] sm:$0xff] %vm40, %v1534
  %1585 = vst.msk [vmem:[%s1 + $0x4a] sm:$0x3f] %vm1572, %v1535
  %1586 = vst.msk [vmem:[%s1 + $0x4a] sm:$0xc0] %vm1569, %v1536
  %1587 = vst.msk [vmem:[%s1 + $0x52] sm:$0xff] %vm40, %v1537
  %1588 = vst.msk [vmem:[%s1 + $0x5a] sm:$0x3f] %vm1572, %v1538
  %1589 = vst.msk [vmem:[%s1 + $0x5a] sm:$0xc0] %vm1569, %v1539
  %1590 = vst.msk [vmem:[%s1 + $0x62] sm:$0xff] %vm40, %v1540
  %1591 = vst.msk [vmem:[%s1 + $0x6a] sm:$0x3f] %vm1572, %v1541
  %1592 = vst.msk [vmem:[%s1 + $0x6a] sm:$0xc0] %vm1569, %v1542
  %1593 = vst.msk [vmem:[%s1 + $0x72] sm:$0xff] %vm40, %v1543
  %1594 = vst.msk [vmem:[%s1 + $0x7a] sm:$0x3f] %vm1572, %v1544
  %1595 = vst.msk [vmem:[%s1 + $0x7a] sm:$0xc0] %vm1569, %v1545
  %1596 = vst.msk [vmem:[%s1 + $0x82] sm:$0xff] %vm40, %v1546
  %1597 = vst.msk [vmem:[%s1 + $0x8a] sm:$0x3f] %vm1572, %v1547
  %1598 = vst.msk [vmem:[%s1 + $0x8a] sm:$0xc0] %vm1569, %v1548
  %1599 = vst.msk [vmem:[%s1 + $0x92] sm:$0xff] %vm40, %v1549
  %1600 = vst.msk [vmem:[%s1 + $0x9a] sm:$0x3f] %vm1572, %v1550
  %1601 = vst.msk [vmem:[%s1 + $0x9a] sm:$0xc0] %vm1569, %v1551
  %1602 = vst.msk [vmem:[%s1 + $0xa2] sm:$0xff] %vm40, %v1552
  %1603 = vst.msk [vmem:[%s1 + $0xaa] sm:$0x3f] %vm1572, %v1553
  %1604 = vst.msk [vmem:[%s1 + $0xaa] sm:$0xc0] %vm1569, %v1554
  %1605 = vst.msk [vmem:[%s1 + $0xb2] sm:$0xff] %vm40, %v1555
  %1606 = vst.msk [vmem:[%s1 + $0xba] sm:$0x3f] %vm1572, %v1556
  %1607 = vst.msk [vmem:[%s1 + $0xba] sm:$0xc0] %vm1569, %v1557
  %1608 = vst.msk [vmem:[%s1 + $0xc2] sm:$0xff] %vm40, %v1558
  %1609 = vst.msk [vmem:[%s1 + $0xca] sm:$0x3f] %vm1572, %v1559
  %1610 = vst.msk [vmem:[%s1 + $0xca] sm:$0xc0] %vm1569, %v1560
  %1611 = vst.msk [vmem:[%s1 + $0xd2] sm:$0xff] %vm40, %v1561
  %1612 = vst.msk [vmem:[%s1 + $0xda] sm:$0x3f] %vm1572, %v1562
  %1613 = vst.msk [vmem:[%s1 + $0xda] sm:$0xc0] %vm1569, %v1563
  %1614 = vst.msk [vmem:[%s1 + $0xe2] sm:$0xff] %vm40, %v1564
  %1615 = vst.msk [vmem:[%s1 + $0xea] sm:$0x3f] %vm1572, %v1565
  %1616 = vst.msk [vmem:[%s1 + $0xea] sm:$0xc0] %vm1569, %v1566
  %1617 = vst.msk [vmem:[%s1 + $0xf2] sm:$0xff] %vm40, %v1567
  %1618 = vst.msk [vmem:[%s1 + $0xfa] sm:$0x3f] %vm1572, %v1568
  %v1683 = vrot.slane %v639, 1
  %v1684 = vrot.slane %v640, 1
  %v1685 = vsel %vm831, %v1683, %v1684
  %v1686 = vrot.slane %v641, 1
  %v1687 = vsel %vm831, %v1684, %v1686
  %v1688 = vrot.slane %v642, 1
  %v1689 = vsel %vm831, %v1686, %v1688
  %v1690 = vrot.slane %v643, 1
  %v1691 = vrot.slane %v644, 1
  %v1692 = vsel %vm831, %v1690, %v1691
  %v1693 = vrot.slane %v645, 1
  %v1694 = vsel %vm831, %v1691, %v1693
  %v1695 = vrot.slane %v646, 1
  %v1696 = vsel %vm831, %v1693, %v1695
  %v1697 = vrot.slane %v647, 1
  %v1698 = vrot.slane %v648, 1
  %v1699 = vsel %vm831, %v1697, %v1698
  %v1700 = vrot.slane %v649, 1
  %v1701 = vsel %vm831, %v1698, %v1700
  %v1702 = vrot.slane %v650, 1
  %v1703 = vsel %vm831, %v1700, %v1702
  %v1704 = vrot.slane %v651, 1
  %v1705 = vrot.slane %v652, 1
  %v1706 = vsel %vm831, %v1704, %v1705
  %v1707 = vrot.slane %v653, 1
  %v1708 = vsel %vm831, %v1705, %v1707
  %v1709 = vrot.slane %v654, 1
  %v1710 = vsel %vm831, %v1707, %v1709
  %v1711 = vrot.slane %v655, 1
  %v1712 = vrot.slane %v656, 1
  %v1713 = vsel %vm831, %v1711, %v1712
  %v1714 = vrot.slane %v657, 1
  %v1715 = vsel %vm831, %v1712, %v1714
  %v1716 = vrot.slane %v658, 1
  %v1717 = vsel %vm831, %v1714, %v1716
  %v1718 = vrot.slane %v659, 1
  %v1719 = vrot.slane %v660, 1
  %v1720 = vsel %vm831, %v1718, %v1719
  %v1721 = vrot.slane %v661, 1
  %v1722 = vsel %vm831, %v1719, %v1721
  %v1723 = vrot.slane %v662, 1
  %v1724 = vsel %vm831, %v1721, %v1723
  %v1725 = vrot.slane %v663, 1
  %v1726 = vrot.slane %v664, 1
  %v1727 = vsel %vm831, %v1725, %v1726
  %v1728 = vrot.slane %v665, 1
  %v1729 = vsel %vm831, %v1726, %v1728
  %v1730 = vrot.slane %v666, 1
  %v1731 = vsel %vm831, %v1728, %v1730
  %v1732 = vrot.slane %v667, 1
  %v1733 = vrot.slane %v668, 1
  %v1734 = vsel %vm831, %v1732, %v1733
  %v1735 = vrot.slane %v669, 1
  %v1736 = vsel %vm831, %v1733, %v1735
  %v1737 = vrot.slane %v670, 1
  %v1738 = vsel %vm831, %v1735, %v1737
  %v1739 = vrot.slane %v671, 1
  %v1740 = vrot.slane %v672, 1
  %v1741 = vsel %vm831, %v1739, %v1740
  %v1742 = vrot.slane %v673, 1
  %v1743 = vsel %vm831, %v1740, %v1742
  %v1744 = vrot.slane %v674, 1
  %v1745 = vsel %vm831, %v1742, %v1744
  %v1746 = vrot.slane %v675, 1
  %v1747 = vrot.slane %v676, 1
  %v1748 = vsel %vm831, %v1746, %v1747
  %v1749 = vrot.slane %v677, 1
  %v1750 = vsel %vm831, %v1747, %v1749
  %v1751 = vrot.slane %v678, 1
  %v1752 = vsel %vm831, %v1749, %v1751
  %v1753 = vrot.slane %v679, 1
  %v1754 = vrot.slane %v680, 1
  %v1755 = vsel %vm831, %v1753, %v1754
  %v1756 = vrot.slane %v681, 1
  %v1757 = vsel %vm831, %v1754, %v1756
  %v1758 = vrot.slane %v682, 1
  %v1759 = vsel %vm831, %v1756, %v1758
  %v1760 = vrot.slane %v683, 1
  %v1761 = vrot.slane %v684, 1
  %v1762 = vsel %vm831, %v1760, %v1761
  %v1763 = vrot.slane %v685, 1
  %v1764 = vsel %vm831, %v1761, %v1763
  %v1765 = vrot.slane %v686, 1
  %v1766 = vsel %vm831, %v1763, %v1765
  %v1767 = vrot.slane %v687, 1
  %v1768 = vrot.slane %v688, 1
  %v1769 = vsel %vm831, %v1767, %v1768
  %v1770 = vrot.slane %v689, 1
  %v1771 = vsel %vm831, %v1768, %v1770
  %v1772 = vrot.slane %v690, 1
  %v1773 = vsel %vm831, %v1770, %v1772
  %v1774 = vrot.slane %v691, 1
  %v1775 = vrot.slane %v692, 1
  %v1776 = vsel %vm831, %v1774, %v1775
  %v1777 = vrot.slane %v693, 1
  %v1778 = vsel %vm831, %v1775, %v1777
  %v1779 = vrot.slane %v694, 1
  %v1780 = vsel %vm831, %v1777, %v1779
  %v1781 = vrot.slane %v695, 1
  %v1782 = vrot.slane %v696, 1
  %v1783 = vsel %vm831, %v1781, %v1782
  %v1784 = vrot.slane %v697, 1
  %v1785 = vsel %vm831, %v1782, %v1784
  %v1786 = vrot.slane %v698, 1
  %v1787 = vsel %vm831, %v1784, %v1786
  %v1788 = vrot.slane %v699, 1
  %v1789 = vrot.slane %v700, 1
  %v1790 = vsel %vm831, %v1788, %v1789
  %v1791 = vrot.slane %v701, 1
  %v1792 = vsel %vm831, %v1789, %v1791
  %v1793 = vrot.slane %v702, 1
  %v1794 = vsel %vm831, %v1791, %v1793
  %v1859 = vmax.f32 %v639, %v1685
  %v1860 = vmax.f32 %v640, %v1687
  %v1861 = vmax.f32 %v641, %v1689
  %v1862 = vmax.f32 %v642, %v1688
  %v1863 = vmax.f32 %v643, %v1692
  %v1864 = vmax.f32 %v644, %v1694
  %v1865 = vmax.f32 %v645, %v1696
  %v1866 = vmax.f32 %v646, %v1695
  %v1867 = vmax.f32 %v647, %v1699
  %v1868 = vmax.f32 %v648, %v1701
  %v1869 = vmax.f32 %v649, %v1703
  %v1870 = vmax.f32 %v650, %v1702
  %v1871 = vmax.f32 %v651, %v1706
  %v1872 = vmax.f32 %v652, %v1708
  %v1873 = vmax.f32 %v653, %v1710
  %v1874 = vmax.f32 %v654, %v1709
  %v1875 = vmax.f32 %v655, %v1713
  %v1876 = vmax.f32 %v656, %v1715
  %v1877 = vmax.f32 %v657, %v1717
  %v1878 = vmax.f32 %v658, %v1716
  %v1879 = vmax.f32 %v659, %v1720
  %v1880 = vmax.f32 %v660, %v1722
  %v1881 = vmax.f32 %v661, %v1724
  %v1882 = vmax.f32 %v662, %v1723
  %v1883 = vmax.f32 %v663, %v1727
  %v1884 = vmax.f32 %v664, %v1729
  %v1885 = vmax.f32 %v665, %v1731
  %v1886 = vmax.f32 %v666, %v1730
  %v1887 = vmax.f32 %v667, %v1734
  %v1888 = vmax.f32 %v668, %v1736
  %v1889 = vmax.f32 %v669, %v1738
  %v1890 = vmax.f32 %v670, %v1737
  %v1891 = vmax.f32 %v671, %v1741
  %v1892 = vmax.f32 %v672, %v1743
  %v1893 = vmax.f32 %v673, %v1745
  %v1894 = vmax.f32 %v674, %v1744
  %v1895 = vmax.f32 %v675, %v1748
  %v1896 = vmax.f32 %v676, %v1750
  %v1897 = vmax.f32 %v677, %v1752
  %v1898 = vmax.f32 %v678, %v1751
  %v1899 = vmax.f32 %v679, %v1755
  %v1900 = vmax.f32 %v680, %v1757
  %v1901 = vmax.f32 %v681, %v1759
  %v1902 = vmax.f32 %v682, %v1758
  %v1903 = vmax.f32 %v683, %v1762
  %v1904 = vmax.f32 %v684, %v1764
  %v1905 = vmax.f32 %v685, %v1766
  %v1906 = vmax.f32 %v686, %v1765
  %v1907 = vmax.f32 %v687, %v1769
  %v1908 = vmax.f32 %v688, %v1771
  %v1909 = vmax.f32 %v689, %v1773
  %v1910 = vmax.f32 %v690, %v1772
  %v1911 = vmax.f32 %v691, %v1776
  %v1912 = vmax.f32 %v692, %v1778
  %v1913 = vmax.f32 %v693, %v1780
  %v1914 = vmax.f32 %v694, %v1779
  %v1915 = vmax.f32 %v695, %v1783
  %v1916 = vmax.f32 %v696, %v1785
  %v1917 = vmax.f32 %v697, %v1787
  %v1918 = vmax.f32 %v698, %v1786
  %v1919 = vmax.f32 %v699, %v1790
  %v1920 = vmax.f32 %v700, %v1792
  %v1921 = vmax.f32 %v701, %v1794
  %v1922 = vmax.f32 %v702, %v1793
  %v1987 = vrot.slane %v1859, 2
  %v1988 = vrot.slane %v1860, 2
  %v1989 = vsel %vm1136, %v1987, %v1988
  %v1990 = vrot.slane %v1861, 2
  %v1991 = vsel %vm1136, %v1988, %v1990
  %v1992 = vrot.slane %v1862, 2
  %v1993 = vsel %vm1136, %v1990, %v1992
  %v1994 = vrot.slane %v1863, 2
  %v1995 = vrot.slane %v1864, 2
  %v1996 = vsel %vm1136, %v1994, %v1995
  %v1997 = vrot.slane %v1865, 2
  %v1998 = vsel %vm1136, %v1995, %v1997
  %v1999 = vrot.slane %v1866, 2
  %v2000 = vsel %vm1136, %v1997, %v1999
  %v2001 = vrot.slane %v1867, 2
  %v2002 = vrot.slane %v1868, 2
  %v2003 = vsel %vm1136, %v2001, %v2002
  %v2004 = vrot.slane %v1869, 2
  %v2005 = vsel %vm1136, %v2002, %v2004
  %v2006 = vrot.slane %v1870, 2
  %v2007 = vsel %vm1136, %v2004, %v2006
  %v2008 = vrot.slane %v1871, 2
  %v2009 = vrot.slane %v1872, 2
  %v2010 = vsel %vm1136, %v2008, %v2009
  %v2011 = vrot.slane %v1873, 2
  %v2012 = vsel %vm1136, %v2009, %v2011
  %v2013 = vrot.slane %v1874, 2
  %v2014 = vsel %vm1136, %v2011, %v2013
  %v2015 = vrot.slane %v1875, 2
  %v2016 = vrot.slane %v1876, 2
  %v2017 = vsel %vm1136, %v2015, %v2016
  %v2018 = vrot.slane %v1877, 2
  %v2019 = vsel %vm1136, %v2016, %v2018
  %v2020 = vrot.slane %v1878, 2
  %v2021 = vsel %vm1136, %v2018, %v2020
  %v2022 = vrot.slane %v1879, 2
  %v2023 = vrot.slane %v1880, 2
  %v2024 = vsel %vm1136, %v2022, %v2023
  %v2025 = vrot.slane %v1881, 2
  %v2026 = vsel %vm1136, %v2023, %v2025
  %v2027 = vrot.slane %v1882, 2
  %v2028 = vsel %vm1136, %v2025, %v2027
  %v2029 = vrot.slane %v1883, 2
  %v2030 = vrot.slane %v1884, 2
  %v2031 = vsel %vm1136, %v2029, %v2030
  %v2032 = vrot.slane %v1885, 2
  %v2033 = vsel %vm1136, %v2030, %v2032
  %v2034 = vrot.slane %v1886, 2
  %v2035 = vsel %vm1136, %v2032, %v2034
  %v2036 = vrot.slane %v1887, 2
  %v2037 = vrot.slane %v1888, 2
  %v2038 = vsel %vm1136, %v2036, %v2037
  %v2039 = vrot.slane %v1889, 2
  %v2040 = vsel %vm1136, %v2037, %v2039
  %v2041 = vrot.slane %v1890, 2
  %v2042 = vsel %vm1136, %v2039, %v2041
  %v2043 = vrot.slane %v1891, 2
  %v2044 = vrot.slane %v1892, 2
  %v2045 = vsel %vm1136, %v2043, %v2044
  %v2046 = vrot.slane %v1893, 2
  %v2047 = vsel %vm1136, %v2044, %v2046
  %v2048 = vrot.slane %v1894, 2
  %v2049 = vsel %vm1136, %v2046, %v2048
  %v2050 = vrot.slane %v1895, 2
  %v2051 = vrot.slane %v1896, 2
  %v2052 = vsel %vm1136, %v2050, %v2051
  %v2053 = vrot.slane %v1897, 2
  %v2054 = vsel %vm1136, %v2051, %v2053
  %v2055 = vrot.slane %v1898, 2
  %v2056 = vsel %vm1136, %v2053, %v2055
  %v2057 = vrot.slane %v1899, 2
  %v2058 = vrot.slane %v1900, 2
  %v2059 = vsel %vm1136, %v2057, %v2058
  %v2060 = vrot.slane %v1901, 2
  %v2061 = vsel %vm1136, %v2058, %v2060
  %v2062 = vrot.slane %v1902, 2
  %v2063 = vsel %vm1136, %v2060, %v2062
  %v2064 = vrot.slane %v1903, 2
  %v2065 = vrot.slane %v1904, 2
  %v2066 = vsel %vm1136, %v2064, %v2065
  %v2067 = vrot.slane %v1905, 2
  %v2068 = vsel %vm1136, %v2065, %v2067
  %v2069 = vrot.slane %v1906, 2
  %v2070 = vsel %vm1136, %v2067, %v2069
  %v2071 = vrot.slane %v1907, 2
  %v2072 = vrot.slane %v1908, 2
  %v2073 = vsel %vm1136, %v2071, %v2072
  %v2074 = vrot.slane %v1909, 2
  %v2075 = vsel %vm1136, %v2072, %v2074
  %v2076 = vrot.slane %v1910, 2
  %v2077 = vsel %vm1136, %v2074, %v2076
  %v2078 = vrot.slane %v1911, 2
  %v2079 = vrot.slane %v1912, 2
  %v2080 = vsel %vm1136, %v2078, %v2079
  %v2081 = vrot.slane %v1913, 2
  %v2082 = vsel %vm1136, %v2079, %v2081
  %v2083 = vrot.slane %v1914, 2
  %v2084 = vsel %vm1136, %v2081, %v2083
  %v2085 = vrot.slane %v1915, 2
  %v2086 = vrot.slane %v1916, 2
  %v2087 = vsel %vm1136, %v2085, %v2086
  %v2088 = vrot.slane %v1917, 2
  %v2089 = vsel %vm1136, %v2086, %v2088
  %v2090 = vrot.slane %v1918, 2
  %v2091 = vsel %vm1136, %v2088, %v2090
  %v2092 = vrot.slane %v1919, 2
  %v2093 = vrot.slane %v1920, 2
  %v2094 = vsel %vm1136, %v2092, %v2093
  %v2095 = vrot.slane %v1921, 2
  %v2096 = vsel %vm1136, %v2093, %v2095
  %v2097 = vrot.slane %v1922, 2
  %v2098 = vsel %vm1136, %v2095, %v2097
  %v2163 = vmax.f32 %v1859, %v1989
  %v2164 = vmax.f32 %v1860, %v1991
  %v2165 = vmax.f32 %v1861, %v1993
  %v2166 = vmax.f32 %v1862, %v1992
  %v2167 = vmax.f32 %v1863, %v1996
  %v2168 = vmax.f32 %v1864, %v1998
  %v2169 = vmax.f32 %v1865, %v2000
  %v2170 = vmax.f32 %v1866, %v1999
  %v2171 = vmax.f32 %v1867, %v2003
  %v2172 = vmax.f32 %v1868, %v2005
  %v2173 = vmax.f32 %v1869, %v2007
  %v2174 = vmax.f32 %v1870, %v2006
  %v2175 = vmax.f32 %v1871, %v2010
  %v2176 = vmax.f32 %v1872, %v2012
  %v2177 = vmax.f32 %v1873, %v2014
  %v2178 = vmax.f32 %v1874, %v2013
  %v2179 = vmax.f32 %v1875, %v2017
  %v2180 = vmax.f32 %v1876, %v2019
  %v2181 = vmax.f32 %v1877, %v2021
  %v2182 = vmax.f32 %v1878, %v2020
  %v2183 = vmax.f32 %v1879, %v2024
  %v2184 = vmax.f32 %v1880, %v2026
  %v2185 = vmax.f32 %v1881, %v2028
  %v2186 = vmax.f32 %v1882, %v2027
  %v2187 = vmax.f32 %v1883, %v2031
  %v2188 = vmax.f32 %v1884, %v2033
  %v2189 = vmax.f32 %v1885, %v2035
  %v2190 = vmax.f32 %v1886, %v2034
  %v2191 = vmax.f32 %v1887, %v2038
  %v2192 = vmax.f32 %v1888, %v2040
  %v2193 = vmax.f32 %v1889, %v2042
  %v2194 = vmax.f32 %v1890, %v2041
  %v2195 = vmax.f32 %v1891, %v2045
  %v2196 = vmax.f32 %v1892, %v2047
  %v2197 = vmax.f32 %v1893, %v2049
  %v2198 = vmax.f32 %v1894, %v2048
  %v2199 = vmax.f32 %v1895, %v2052
  %v2200 = vmax.f32 %v1896, %v2054
  %v2201 = vmax.f32 %v1897, %v2056
  %v2202 = vmax.f32 %v1898, %v2055
  %v2203 = vmax.f32 %v1899, %v2059
  %v2204 = vmax.f32 %v1900, %v2061
  %v2205 = vmax.f32 %v1901, %v2063
  %v2206 = vmax.f32 %v1902, %v2062
  %v2207 = vmax.f32 %v1903, %v2066
  %v2208 = vmax.f32 %v1904, %v2068
  %v2209 = vmax.f32 %v1905, %v2070
  %v2210 = vmax.f32 %v1906, %v2069
  %v2211 = vmax.f32 %v1907, %v2073
  %v2212 = vmax.f32 %v1908, %v2075
  %v2213 = vmax.f32 %v1909, %v2077
  %v2214 = vmax.f32 %v1910, %v2076
  %v2215 = vmax.f32 %v1911, %v2080
  %v2216 = vmax.f32 %v1912, %v2082
  %v2217 = vmax.f32 %v1913, %v2084
  %v2218 = vmax.f32 %v1914, %v2083
  %v2219 = vmax.f32 %v1915, %v2087
  %v2220 = vmax.f32 %v1916, %v2089
  %v2221 = vmax.f32 %v1917, %v2091
  %v2222 = vmax.f32 %v1918, %v2090
  %v2223 = vmax.f32 %v1919, %v2094
  %v2224 = vmax.f32 %v1920, %v2096
  %v2225 = vmax.f32 %v1921, %v2098
  %v2226 = vmax.f32 %v1922, %v2097
  %vm2291 = vcmask 1043456
  %v2292 = vrot.slane %v2163, 4
  %v2293 = vrot.slane %v2164, 4
  %v2294 = vsel %vm2291, %v2292, %v2293
  %v2295 = vrot.slane %v2165, 4
  %v2296 = vsel %vm2291, %v2293, %v2295
  %v2297 = vrot.slane %v2166, 4
  %v2298 = vsel %vm2291, %v2295, %v2297
  %v2299 = vrot.slane %v2167, 4
  %v2300 = vrot.slane %v2168, 4
  %v2301 = vsel %vm2291, %v2299, %v2300
  %v2302 = vrot.slane %v2169, 4
  %v2303 = vsel %vm2291, %v2300, %v2302
  %v2304 = vrot.slane %v2170, 4
  %v2305 = vsel %vm2291, %v2302, %v2304
  %v2306 = vrot.slane %v2171, 4
  %v2307 = vrot.slane %v2172, 4
  %v2308 = vsel %vm2291, %v2306, %v2307
  %v2309 = vrot.slane %v2173, 4
  %v2310 = vsel %vm2291, %v2307, %v2309
  %v2311 = vrot.slane %v2174, 4
  %v2312 = vsel %vm2291, %v2309, %v2311
  %v2313 = vrot.slane %v2175, 4
  %v2314 = vrot.slane %v2176, 4
  %v2315 = vsel %vm2291, %v2313, %v2314
  %v2316 = vrot.slane %v2177, 4
  %v2317 = vsel %vm2291, %v2314, %v2316
  %v2318 = vrot.slane %v2178, 4
  %v2319 = vsel %vm2291, %v2316, %v2318
  %v2320 = vrot.slane %v2179, 4
  %v2321 = vrot.slane %v2180, 4
  %v2322 = vsel %vm2291, %v2320, %v2321
  %v2323 = vrot.slane %v2181, 4
  %v2324 = vsel %vm2291, %v2321, %v2323
  %v2325 = vrot.slane %v2182, 4
  %v2326 = vsel %vm2291, %v2323, %v2325
  %v2327 = vrot.slane %v2183, 4
  %v2328 = vrot.slane %v2184, 4
  %v2329 = vsel %vm2291, %v2327, %v2328
  %v2330 = vrot.slane %v2185, 4
  %v2331 = vsel %vm2291, %v2328, %v2330
  %v2332 = vrot.slane %v2186, 4
  %v2333 = vsel %vm2291, %v2330, %v2332
  %v2334 = vrot.slane %v2187, 4
  %v2335 = vrot.slane %v2188, 4
  %v2336 = vsel %vm2291, %v2334, %v2335
  %v2337 = vrot.slane %v2189, 4
  %v2338 = vsel %vm2291, %v2335, %v2337
  %v2339 = vrot.slane %v2190, 4
  %v2340 = vsel %vm2291, %v2337, %v2339
  %v2341 = vrot.slane %v2191, 4
  %v2342 = vrot.slane %v2192, 4
  %v2343 = vsel %vm2291, %v2341, %v2342
  %v2344 = vrot.slane %v2193, 4
  %v2345 = vsel %vm2291, %v2342, %v2344
  %v2346 = vrot.slane %v2194, 4
  %v2347 = vsel %vm2291, %v2344, %v2346
  %v2348 = vrot.slane %v2195, 4
  %v2349 = vrot.slane %v2196, 4
  %v2350 = vsel %vm2291, %v2348, %v2349
  %v2351 = vrot.slane %v2197, 4
  %v2352 = vsel %vm2291, %v2349, %v2351
  %v2353 = vrot.slane %v2198, 4
  %v2354 = vsel %vm2291, %v2351, %v2353
  %v2355 = vrot.slane %v2199, 4
  %v2356 = vrot.slane %v2200, 4
  %v2357 = vsel %vm2291, %v2355, %v2356
  %v2358 = vrot.slane %v2201, 4
  %v2359 = vsel %vm2291, %v2356, %v2358
  %v2360 = vrot.slane %v2202, 4
  %v2361 = vsel %vm2291, %v2358, %v2360
  %v2362 = vrot.slane %v2203, 4
  %v2363 = vrot.slane %v2204, 4
  %v2364 = vsel %vm2291, %v2362, %v2363
  %v2365 = vrot.slane %v2205, 4
  %v2366 = vsel %vm2291, %v2363, %v2365
  %v2367 = vrot.slane %v2206, 4
  %v2368 = vsel %vm2291, %v2365, %v2367
  %v2369 = vrot.slane %v2207, 4
  %v2370 = vrot.slane %v2208, 4
  %v2371 = vsel %vm2291, %v2369, %v2370
  %v2372 = vrot.slane %v2209, 4
  %v2373 = vsel %vm2291, %v2370, %v2372
  %v2374 = vrot.slane %v2210, 4
  %v2375 = vsel %vm2291, %v2372, %v2374
  %v2376 = vrot.slane %v2211, 4
  %v2377 = vrot.slane %v2212, 4
  %v2378 = vsel %vm2291, %v2376, %v2377
  %v2379 = vrot.slane %v2213, 4
  %v2380 = vsel %vm2291, %v2377, %v2379
  %v2381 = vrot.slane %v2214, 4
  %v2382 = vsel %vm2291, %v2379, %v2381
  %v2383 = vrot.slane %v2215, 4
  %v2384 = vrot.slane %v2216, 4
  %v2385 = vsel %vm2291, %v2383, %v2384
  %v2386 = vrot.slane %v2217, 4
  %v2387 = vsel %vm2291, %v2384, %v2386
  %v2388 = vrot.slane %v2218, 4
  %v2389 = vsel %vm2291, %v2386, %v2388
  %v2390 = vrot.slane %v2219, 4
  %v2391 = vrot.slane %v2220, 4
  %v2392 = vsel %vm2291, %v2390, %v2391
  %v2393 = vrot.slane %v2221, 4
  %v2394 = vsel %vm2291, %v2391, %v2393
  %v2395 = vrot.slane %v2222, 4
  %v2396 = vsel %vm2291, %v2393, %v2395
  %v2397 = vrot.slane %v2223, 4
  %v2398 = vrot.slane %v2224, 4
  %v2399 = vsel %vm2291, %v2397, %v2398
  %v2400 = vrot.slane %v2225, 4
  %v2401 = vsel %vm2291, %v2398, %v2400
  %v2402 = vrot.slane %v2226, 4
  %v2403 = vsel %vm2291, %v2400, %v2402
  %v2452 = vmax.f32 %v2163, %v2294
  %v2453 = vmax.f32 %v2164, %v2296
  %v2454 = vmax.f32 %v2165, %v2298
  %v2455 = vmax.f32 %v2167, %v2301
  %v2456 = vmax.f32 %v2168, %v2303
  %v2457 = vmax.f32 %v2169, %v2305
  %v2458 = vmax.f32 %v2171, %v2308
  %v2459 = vmax.f32 %v2172, %v2310
  %v2460 = vmax.f32 %v2173, %v2312
  %v2461 = vmax.f32 %v2175, %v2315
  %v2462 = vmax.f32 %v2176, %v2317
  %v2463 = vmax.f32 %v2177, %v2319
  %v2464 = vmax.f32 %v2179, %v2322
  %v2465 = vmax.f32 %v2180, %v2324
  %v2466 = vmax.f32 %v2181, %v2326
  %v2467 = vmax.f32 %v2183, %v2329
  %v2468 = vmax.f32 %v2184, %v2331
  %v2469 = vmax.f32 %v2185, %v2333
  %v2470 = vmax.f32 %v2187, %v2336
  %v2471 = vmax.f32 %v2188, %v2338
  %v2472 = vmax.f32 %v2189, %v2340
  %v2473 = vmax.f32 %v2191, %v2343
  %v2474 = vmax.f32 %v2192, %v2345
  %v2475 = vmax.f32 %v2193, %v2347
  %v2476 = vmax.f32 %v2195, %v2350
  %v2477 = vmax.f32 %v2196, %v2352
  %v2478 = vmax.f32 %v2197, %v2354
  %v2479 = vmax.f32 %v2199, %v2357
  %v2480 = vmax.f32 %v2200, %v2359
  %v2481 = vmax.f32 %v2201, %v2361
  %v2482 = vmax.f32 %v2203, %v2364
  %v2483 = vmax.f32 %v2204, %v2366
  %v2484 = vmax.f32 %v2205, %v2368
  %v2485 = vmax.f32 %v2207, %v2371
  %v2486 = vmax.f32 %v2208, %v2373
  %v2487 = vmax.f32 %v2209, %v2375
  %v2488 = vmax.f32 %v2211, %v2378
  %v2489 = vmax.f32 %v2212, %v2380
  %v2490 = vmax.f32 %v2213, %v2382
  %v2491 = vmax.f32 %v2215, %v2385
  %v2492 = vmax.f32 %v2216, %v2387
  %v2493 = vmax.f32 %v2217, %v2389
  %v2494 = vmax.f32 %v2219, %v2392
  %v2495 = vmax.f32 %v2220, %v2394
  %v2496 = vmax.f32 %v2221, %v2396
  %v2497 = vmax.f32 %v2223, %v2399
  %v2498 = vmax.f32 %v2224, %v2401
  %v2499 = vmax.f32 %v2225, %v2403
  %v2548 = vrot.slane %v2452, 1
  %v2549 = vrot.slane %v2453, 1
  %v2550 = vsel %vm831, %v2548, %v2549
  %v2551 = vrot.slane %v2454, 1
  %v2552 = vsel %vm831, %v2549, %v2551
  %v2553 = vrot.slane %v2455, 1
  %v2554 = vrot.slane %v2456, 1
  %v2555 = vsel %vm831, %v2553, %v2554
  %v2556 = vrot.slane %v2457, 1
  %v2557 = vsel %vm831, %v2554, %v2556
  %v2558 = vrot.slane %v2458, 1
  %v2559 = vrot.slane %v2459, 1
  %v2560 = vsel %vm831, %v2558, %v2559
  %v2561 = vrot.slane %v2460, 1
  %v2562 = vsel %vm831, %v2559, %v2561
  %v2563 = vrot.slane %v2461, 1
  %v2564 = vrot.slane %v2462, 1
  %v2565 = vsel %vm831, %v2563, %v2564
  %v2566 = vrot.slane %v2463, 1
  %v2567 = vsel %vm831, %v2564, %v2566
  %v2568 = vrot.slane %v2464, 1
  %v2569 = vrot.slane %v2465, 1
  %v2570 = vsel %vm831, %v2568, %v2569
  %v2571 = vrot.slane %v2466, 1
  %v2572 = vsel %vm831, %v2569, %v2571
  %v2573 = vrot.slane %v2467, 1
  %v2574 = vrot.slane %v2468, 1
  %v2575 = vsel %vm831, %v2573, %v2574
  %v2576 = vrot.slane %v2469, 1
  %v2577 = vsel %vm831, %v2574, %v2576
  %v2578 = vrot.slane %v2470, 1
  %v2579 = vrot.slane %v2471, 1
  %v2580 = vsel %vm831, %v2578, %v2579
  %v2581 = vrot.slane %v2472, 1
  %v2582 = vsel %vm831, %v2579, %v2581
  %v2583 = vrot.slane %v2473, 1
  %v2584 = vrot.slane %v2474, 1
  %v2585 = vsel %vm831, %v2583, %v2584
  %v2586 = vrot.slane %v2475, 1
  %v2587 = vsel %vm831, %v2584, %v2586
  %v2588 = vrot.slane %v2476, 1
  %v2589 = vrot.slane %v2477, 1
  %v2590 = vsel %vm831, %v2588, %v2589
  %v2591 = vrot.slane %v2478, 1
  %v2592 = vsel %vm831, %v2589, %v2591
  %v2593 = vrot.slane %v2479, 1
  %v2594 = vrot.slane %v2480, 1
  %v2595 = vsel %vm831, %v2593, %v2594
  %v2596 = vrot.slane %v2481, 1
  %v2597 = vsel %vm831, %v2594, %v2596
  %v2598 = vrot.slane %v2482, 1
  %v2599 = vrot.slane %v2483, 1
  %v2600 = vsel %vm831, %v2598, %v2599
  %v2601 = vrot.slane %v2484, 1
  %v2602 = vsel %vm831, %v2599, %v2601
  %v2603 = vrot.slane %v2485, 1
  %v2604 = vrot.slane %v2486, 1
  %v2605 = vsel %vm831, %v2603, %v2604
  %v2606 = vrot.slane %v2487, 1
  %v2607 = vsel %vm831, %v2604, %v2606
  %v2608 = vrot.slane %v2488, 1
  %v2609 = vrot.slane %v2489, 1
  %v2610 = vsel %vm831, %v2608, %v2609
  %v2611 = vrot.slane %v2490, 1
  %v2612 = vsel %vm831, %v2609, %v2611
  %v2613 = vrot.slane %v2491, 1
  %v2614 = vrot.slane %v2492, 1
  %v2615 = vsel %vm831, %v2613, %v2614
  %v2616 = vrot.slane %v2493, 1
  %v2617 = vsel %vm831, %v2614, %v2616
  %v2618 = vrot.slane %v2494, 1
  %v2619 = vrot.slane %v2495, 1
  %v2620 = vsel %vm831, %v2618, %v2619
  %v2621 = vrot.slane %v2496, 1
  %v2622 = vsel %vm831, %v2619, %v2621
  %v2623 = vrot.slane %v2497, 1
  %v2624 = vrot.slane %v2498, 1
  %v2625 = vsel %vm831, %v2623, %v2624
  %v2626 = vrot.slane %v2499, 1
  %v2627 = vsel %vm831, %v2624, %v2626
  %v2676 = vmax.f32 %v2452, %v2550
  %v2677 = vmax.f32 %v2453, %v2552
  %v2678 = vmax.f32 %v2454, %v2551
  %v2679 = vmax.f32 %v2455, %v2555
  %v2680 = vmax.f32 %v2456, %v2557
  %v2681 = vmax.f32 %v2457, %v2556
  %v2682 = vmax.f32 %v2458, %v2560
  %v2683 = vmax.f32 %v2459, %v2562
  %v2684 = vmax.f32 %v2460, %v2561
  %v2685 = vmax.f32 %v2461, %v2565
  %v2686 = vmax.f32 %v2462, %v2567
  %v2687 = vmax.f32 %v2463, %v2566
  %v2688 = vmax.f32 %v2464, %v2570
  %v2689 = vmax.f32 %v2465, %v2572
  %v2690 = vmax.f32 %v2466, %v2571
  %v2691 = vmax.f32 %v2467, %v2575
  %v2692 = vmax.f32 %v2468, %v2577
  %v2693 = vmax.f32 %v2469, %v2576
  %v2694 = vmax.f32 %v2470, %v2580
  %v2695 = vmax.f32 %v2471, %v2582
  %v2696 = vmax.f32 %v2472, %v2581
  %v2697 = vmax.f32 %v2473, %v2585
  %v2698 = vmax.f32 %v2474, %v2587
  %v2699 = vmax.f32 %v2475, %v2586
  %v2700 = vmax.f32 %v2476, %v2590
  %v2701 = vmax.f32 %v2477, %v2592
  %v2702 = vmax.f32 %v2478, %v2591
  %v2703 = vmax.f32 %v2479, %v2595
  %v2704 = vmax.f32 %v2480, %v2597
  %v2705 = vmax.f32 %v2481, %v2596
  %v2706 = vmax.f32 %v2482, %v2600
  %v2707 = vmax.f32 %v2483, %v2602
  %v2708 = vmax.f32 %v2484, %v2601
  %v2709 = vmax.f32 %v2485, %v2605
  %v2710 = vmax.f32 %v2486, %v2607
  %v2711 = vmax.f32 %v2487, %v2606
  %v2712 = vmax.f32 %v2488, %v2610
  %v2713 = vmax.f32 %v2489, %v2612
  %v2714 = vmax.f32 %v2490, %v2611
  %v2715 = vmax.f32 %v2491, %v2615
  %v2716 = vmax.f32 %v2492, %v2617
  %v2717 = vmax.f32 %v2493, %v2616
  %v2718 = vmax.f32 %v2494, %v2620
  %v2719 = vmax.f32 %v2495, %v2622
  %v2720 = vmax.f32 %v2496, %v2621
  %v2721 = vmax.f32 %v2497, %v2625
  %v2722 = vmax.f32 %v2498, %v2627
  %v2723 = vmax.f32 %v2499, %v2626
  %s2724 = scalar_lea.vmem %s1, 256
  %vm2725 = vcmask 64516
  %2726 = vst.msk [vmem:[%s2724 - $0x4] sm:$0xf0] %vm2725, %v2676
  %2727 = vst.msk [vmem:[%s2724 + $0x4] sm:$0xff] %vm40, %v2677
  %vm2728 = vcmask 60416
  %2729 = vst.msk [vmem:[%s2724 + $0xc] sm:$0xf] %vm2728, %v2678
  %2730 = vst.msk [vmem:[%s2724 + $0xc] sm:$0xf0] %vm2725, %v2679
  %2731 = vst.msk [vmem:[%s2724 + $0x14] sm:$0xff] %vm40, %v2680
  %2732 = vst.msk [vmem:[%s2724 + $0x1c] sm:$0xf] %vm2728, %v2681
  %2733 = vst.msk [vmem:[%s2724 + $0x1c] sm:$0xf0] %vm2725, %v2682
  %2734 = vst.msk [vmem:[%s2724 + $0x24] sm:$0xff] %vm40, %v2683
  %2735 = vst.msk [vmem:[%s2724 + $0x2c] sm:$0xf] %vm2728, %v2684
  %2736 = vst.msk [vmem:[%s2724 + $0x2c] sm:$0xf0] %vm2725, %v2685
  %2737 = vst.msk [vmem:[%s2724 + $0x34] sm:$0xff] %vm40, %v2686
  %2738 = vst.msk [vmem:[%s2724 + $0x3c] sm:$0xf] %vm2728, %v2687
  %2739 = vst.msk [vmem:[%s2724 + $0x3c] sm:$0xf0] %vm2725, %v2688
  %2740 = vst.msk [vmem:[%s2724 + $0x44] sm:$0xff] %vm40, %v2689
  %2741 = vst.msk [vmem:[%s2724 + $0x4c] sm:$0xf] %vm2728, %v2690
  %2742 = vst.msk [vmem:[%s2724 + $0x4c] sm:$0xf0] %vm2725, %v2691
  %2743 = vst.msk [vmem:[%s2724 + $0x54] sm:$0xff] %vm40, %v2692
  %2744 = vst.msk [vmem:[%s2724 + $0x5c] sm:$0xf] %vm2728, %v2693
  %2745 = vst.msk [vmem:[%s2724 + $0x5c] sm:$0xf0] %vm2725, %v2694
  %2746 = vst.msk [vmem:[%s2724 + $0x64] sm:$0xff] %vm40, %v2695
  %2747 = vst.msk [vmem:[%s2724 + $0x6c] sm:$0xf] %vm2728, %v2696
  %2748 = vst.msk [vmem:[%s2724 + $0x6c] sm:$0xf0] %vm2725, %v2697
  %2749 = vst.msk [vmem:[%s2724 + $0x74] sm:$0xff] %vm40, %v2698
  %2750 = vst.msk [vmem:[%s2724 + $0x7c] sm:$0xf] %vm2728, %v2699
  %2751 = vst.msk [vmem:[%s2724 + $0x7c] sm:$0xf0] %vm2725, %v2700
  %2752 = vst.msk [vmem:[%s2724 + $0x84] sm:$0xff] %vm40, %v2701
  %2753 = vst.msk [vmem:[%s2724 + $0x8c] sm:$0xf] %vm2728, %v2702
  %2754 = vst.msk [vmem:[%s2724 + $0x8c] sm:$0xf0] %vm2725, %v2703
  %2755 = vst.msk [vmem:[%s2724 + $0x94] sm:$0xff] %vm40, %v2704
  %2756 = vst.msk [vmem:[%s2724 + $0x9c] sm:$0xf] %vm2728, %v2705
  %2757 = vst.msk [vmem:[%s2724 + $0x9c] sm:$0xf0] %vm2725, %v2706
  %2758 = vst.msk [vmem:[%s2724 + $0xa4] sm:$0xff] %vm40, %v2707
  %2759 = vst.msk [vmem:[%s2724 + $0xac] sm:$0xf] %vm2728, %v2708
  %2760 = vst.msk [vmem:[%s2724 + $0xac] sm:$0xf0] %vm2725, %v2709
  %2761 = vst.msk [vmem:[%s2724 + $0xb4] sm:$0xff] %vm40, %v2710
  %2762 = vst.msk [vmem:[%s2724 + $0xbc] sm:$0xf] %vm2728, %v2711
  %2763 = vst.msk [vmem:[%s2724 + $0xbc] sm:$0xf0] %vm2725, %v2712
  %2764 = vst.msk [vmem:[%s2724 + $0xc4] sm:$0xff] %vm40, %v2713
  %2765 = vst.msk [vmem:[%s2724 + $0xcc] sm:$0xf] %vm2728, %v2714
  %2766 = vst.msk [vmem:[%s2724 + $0xcc] sm:$0xf0] %vm2725, %v2715
  %2767 = vst.msk [vmem:[%s2724 + $0xd4] sm:$0xff] %vm40, %v2716
  %2768 = vst.msk [vmem:[%s2724 + $0xdc] sm:$0xf] %vm2728, %v2717
  %2769 = vst.msk [vmem:[%s2724 + $0xdc] sm:$0xf0] %vm2725, %v2718
  %2770 = vst.msk [vmem:[%s2724 + $0xe4] sm:$0xff] %vm40, %v2719
  %2771 = vst.msk [vmem:[%s2724 + $0xec] sm:$0xf] %vm2728, %v2720
  %2772 = vst.msk [vmem:[%s2724 + $0xec] sm:$0xf0] %vm2725, %v2721
  %2773 = vst.msk [vmem:[%s2724 + $0xf4] sm:$0xff] %vm40, %v2722
  %2774 = vst.msk [vmem:[%s2724 + $0xfc] sm:$0xf] %vm2728, %v2723
  %v2839 = vrot.slane %v703, 1
  %v2840 = vrot.slane %v704, 1
  %v2841 = vsel %vm831, %v2839, %v2840
  %v2842 = vrot.slane %v705, 1
  %v2843 = vsel %vm831, %v2840, %v2842
  %v2844 = vrot.slane %v706, 1
  %v2845 = vsel %vm831, %v2842, %v2844
  %v2846 = vrot.slane %v707, 1
  %v2847 = vrot.slane %v708, 1
  %v2848 = vsel %vm831, %v2846, %v2847
  %v2849 = vrot.slane %v709, 1
  %v2850 = vsel %vm831, %v2847, %v2849
  %v2851 = vrot.slane %v710, 1
  %v2852 = vsel %vm831, %v2849, %v2851
  %v2853 = vrot.slane %v711, 1
  %v2854 = vrot.slane %v712, 1
  %v2855 = vsel %vm831, %v2853, %v2854
  %v2856 = vrot.slane %v713, 1
  %v2857 = vsel %vm831, %v2854, %v2856
  %v2858 = vrot.slane %v714, 1
  %v2859 = vsel %vm831, %v2856, %v2858
  %v2860 = vrot.slane %v715, 1
  %v2861 = vrot.slane %v716, 1
  %v2862 = vsel %vm831, %v2860, %v2861
  %v2863 = vrot.slane %v717, 1
  %v2864 = vsel %vm831, %v2861, %v2863
  %v2865 = vrot.slane %v718, 1
  %v2866 = vsel %vm831, %v2863, %v2865
  %v2867 = vrot.slane %v719, 1
  %v2868 = vrot.slane %v720, 1
  %v2869 = vsel %vm831, %v2867, %v2868
  %v2870 = vrot.slane %v721, 1
  %v2871 = vsel %vm831, %v2868, %v2870
  %v2872 = vrot.slane %v722, 1
  %v2873 = vsel %vm831, %v2870, %v2872
  %v2874 = vrot.slane %v723, 1
  %v2875 = vrot.slane %v724, 1
  %v2876 = vsel %vm831, %v2874, %v2875
  %v2877 = vrot.slane %v725, 1
  %v2878 = vsel %vm831, %v2875, %v2877
  %v2879 = vrot.slane %v726, 1
  %v2880 = vsel %vm831, %v2877, %v2879
  %v2881 = vrot.slane %v727, 1
  %v2882 = vrot.slane %v728, 1
  %v2883 = vsel %vm831, %v2881, %v2882
  %v2884 = vrot.slane %v729, 1
  %v2885 = vsel %vm831, %v2882, %v2884
  %v2886 = vrot.slane %v730, 1
  %v2887 = vsel %vm831, %v2884, %v2886
  %v2888 = vrot.slane %v731, 1
  %v2889 = vrot.slane %v732, 1
  %v2890 = vsel %vm831, %v2888, %v2889
  %v2891 = vrot.slane %v733, 1
  %v2892 = vsel %vm831, %v2889, %v2891
  %v2893 = vrot.slane %v734, 1
  %v2894 = vsel %vm831, %v2891, %v2893
  %v2895 = vrot.slane %v735, 1
  %v2896 = vrot.slane %v736, 1
  %v2897 = vsel %vm831, %v2895, %v2896
  %v2898 = vrot.slane %v737, 1
  %v2899 = vsel %vm831, %v2896, %v2898
  %v2900 = vrot.slane %v738, 1
  %v2901 = vsel %vm831, %v2898, %v2900
  %v2902 = vrot.slane %v739, 1
  %v2903 = vrot.slane %v740, 1
  %v2904 = vsel %vm831, %v2902, %v2903
  %v2905 = vrot.slane %v741, 1
  %v2906 = vsel %vm831, %v2903, %v2905
  %v2907 = vrot.slane %v742, 1
  %v2908 = vsel %vm831, %v2905, %v2907
  %v2909 = vrot.slane %v743, 1
  %v2910 = vrot.slane %v744, 1
  %v2911 = vsel %vm831, %v2909, %v2910
  %v2912 = vrot.slane %v745, 1
  %v2913 = vsel %vm831, %v2910, %v2912
  %v2914 = vrot.slane %v746, 1
  %v2915 = vsel %vm831, %v2912, %v2914
  %v2916 = vrot.slane %v747, 1
  %v2917 = vrot.slane %v748, 1
  %v2918 = vsel %vm831, %v2916, %v2917
  %v2919 = vrot.slane %v749, 1
  %v2920 = vsel %vm831, %v2917, %v2919
  %v2921 = vrot.slane %v750, 1
  %v2922 = vsel %vm831, %v2919, %v2921
  %v2923 = vrot.slane %v751, 1
  %v2924 = vrot.slane %v752, 1
  %v2925 = vsel %vm831, %v2923, %v2924
  %v2926 = vrot.slane %v753, 1
  %v2927 = vsel %vm831, %v2924, %v2926
  %v2928 = vrot.slane %v754, 1
  %v2929 = vsel %vm831, %v2926, %v2928
  %v2930 = vrot.slane %v755, 1
  %v2931 = vrot.slane %v756, 1
  %v2932 = vsel %vm831, %v2930, %v2931
  %v2933 = vrot.slane %v757, 1
  %v2934 = vsel %vm831, %v2931, %v2933
  %v2935 = vrot.slane %v758, 1
  %v2936 = vsel %vm831, %v2933, %v2935
  %v2937 = vrot.slane %v759, 1
  %v2938 = vrot.slane %v760, 1
  %v2939 = vsel %vm831, %v2937, %v2938
  %v2940 = vrot.slane %v761, 1
  %v2941 = vsel %vm831, %v2938, %v2940
  %v2942 = vrot.slane %v762, 1
  %v2943 = vsel %vm831, %v2940, %v2942
  %v2944 = vrot.slane %v763, 1
  %v2945 = vrot.slane %v764, 1
  %v2946 = vsel %vm831, %v2944, %v2945
  %v2947 = vrot.slane %v765, 1
  %v2948 = vsel %vm831, %v2945, %v2947
  %v2949 = vrot.slane %v766, 1
  %v2950 = vsel %vm831, %v2947, %v2949
  %v3015 = vmax.f32 %v703, %v2841
  %v3016 = vmax.f32 %v704, %v2843
  %v3017 = vmax.f32 %v705, %v2845
  %v3018 = vmax.f32 %v706, %v2844
  %v3019 = vmax.f32 %v707, %v2848
  %v3020 = vmax.f32 %v708, %v2850
  %v3021 = vmax.f32 %v709, %v2852
  %v3022 = vmax.f32 %v710, %v2851
  %v3023 = vmax.f32 %v711, %v2855
  %v3024 = vmax.f32 %v712, %v2857
  %v3025 = vmax.f32 %v713, %v2859
  %v3026 = vmax.f32 %v714, %v2858
  %v3027 = vmax.f32 %v715, %v2862
  %v3028 = vmax.f32 %v716, %v2864
  %v3029 = vmax.f32 %v717, %v2866
  %v3030 = vmax.f32 %v718, %v2865
  %v3031 = vmax.f32 %v719, %v2869
  %v3032 = vmax.f32 %v720, %v2871
  %v3033 = vmax.f32 %v721, %v2873
  %v3034 = vmax.f32 %v722, %v2872
  %v3035 = vmax.f32 %v723, %v2876
  %v3036 = vmax.f32 %v724, %v2878
  %v3037 = vmax.f32 %v725, %v2880
  %v3038 = vmax.f32 %v726, %v2879
  %v3039 = vmax.f32 %v727, %v2883
  %v3040 = vmax.f32 %v728, %v2885
  %v3041 = vmax.f32 %v729, %v2887
  %v3042 = vmax.f32 %v730, %v2886
  %v3043 = vmax.f32 %v731, %v2890
  %v3044 = vmax.f32 %v732, %v2892
  %v3045 = vmax.f32 %v733, %v2894
  %v3046 = vmax.f32 %v734, %v2893
  %v3047 = vmax.f32 %v735, %v2897
  %v3048 = vmax.f32 %v736, %v2899
  %v3049 = vmax.f32 %v737, %v2901
  %v3050 = vmax.f32 %v738, %v2900
  %v3051 = vmax.f32 %v739, %v2904
  %v3052 = vmax.f32 %v740, %v2906
  %v3053 = vmax.f32 %v741, %v2908
  %v3054 = vmax.f32 %v742, %v2907
  %v3055 = vmax.f32 %v743, %v2911
  %v3056 = vmax.f32 %v744, %v2913
  %v3057 = vmax.f32 %v745, %v2915
  %v3058 = vmax.f32 %v746, %v2914
  %v3059 = vmax.f32 %v747, %v2918
  %v3060 = vmax.f32 %v748, %v2920
  %v3061 = vmax.f32 %v749, %v2922
  %v3062 = vmax.f32 %v750, %v2921
  %v3063 = vmax.f32 %v751, %v2925
  %v3064 = vmax.f32 %v752, %v2927
  %v3065 = vmax.f32 %v753, %v2929
  %v3066 = vmax.f32 %v754, %v2928
  %v3067 = vmax.f32 %v755, %v2932
  %v3068 = vmax.f32 %v756, %v2934
  %v3069 = vmax.f32 %v757, %v2936
  %v3070 = vmax.f32 %v758, %v2935
  %v3071 = vmax.f32 %v759, %v2939
  %v3072 = vmax.f32 %v760, %v2941
  %v3073 = vmax.f32 %v761, %v2943
  %v3074 = vmax.f32 %v762, %v2942
  %v3075 = vmax.f32 %v763, %v2946
  %v3076 = vmax.f32 %v764, %v2948
  %v3077 = vmax.f32 %v765, %v2950
  %v3078 = vmax.f32 %v766, %v2949
  %v3143 = vrot.slane %v3015, 2
  %v3144 = vrot.slane %v3016, 2
  %v3145 = vsel %vm1136, %v3143, %v3144
  %v3146 = vrot.slane %v3017, 2
  %v3147 = vsel %vm1136, %v3144, %v3146
  %v3148 = vrot.slane %v3018, 2
  %v3149 = vsel %vm1136, %v3146, %v3148
  %v3150 = vrot.slane %v3019, 2
  %v3151 = vrot.slane %v3020, 2
  %v3152 = vsel %vm1136, %v3150, %v3151
  %v3153 = vrot.slane %v3021, 2
  %v3154 = vsel %vm1136, %v3151, %v3153
  %v3155 = vrot.slane %v3022, 2
  %v3156 = vsel %vm1136, %v3153, %v3155
  %v3157 = vrot.slane %v3023, 2
  %v3158 = vrot.slane %v3024, 2
  %v3159 = vsel %vm1136, %v3157, %v3158
  %v3160 = vrot.slane %v3025, 2
  %v3161 = vsel %vm1136, %v3158, %v3160
  %v3162 = vrot.slane %v3026, 2
  %v3163 = vsel %vm1136, %v3160, %v3162
  %v3164 = vrot.slane %v3027, 2
  %v3165 = vrot.slane %v3028, 2
  %v3166 = vsel %vm1136, %v3164, %v3165
  %v3167 = vrot.slane %v3029, 2
  %v3168 = vsel %vm1136, %v3165, %v3167
  %v3169 = vrot.slane %v3030, 2
  %v3170 = vsel %vm1136, %v3167, %v3169
  %v3171 = vrot.slane %v3031, 2
  %v3172 = vrot.slane %v3032, 2
  %v3173 = vsel %vm1136, %v3171, %v3172
  %v3174 = vrot.slane %v3033, 2
  %v3175 = vsel %vm1136, %v3172, %v3174
  %v3176 = vrot.slane %v3034, 2
  %v3177 = vsel %vm1136, %v3174, %v3176
  %v3178 = vrot.slane %v3035, 2
  %v3179 = vrot.slane %v3036, 2
  %v3180 = vsel %vm1136, %v3178, %v3179
  %v3181 = vrot.slane %v3037, 2
  %v3182 = vsel %vm1136, %v3179, %v3181
  %v3183 = vrot.slane %v3038, 2
  %v3184 = vsel %vm1136, %v3181, %v3183
  %v3185 = vrot.slane %v3039, 2
  %v3186 = vrot.slane %v3040, 2
  %v3187 = vsel %vm1136, %v3185, %v3186
  %v3188 = vrot.slane %v3041, 2
  %v3189 = vsel %vm1136, %v3186, %v3188
  %v3190 = vrot.slane %v3042, 2
  %v3191 = vsel %vm1136, %v3188, %v3190
  %v3192 = vrot.slane %v3043, 2
  %v3193 = vrot.slane %v3044, 2
  %v3194 = vsel %vm1136, %v3192, %v3193
  %v3195 = vrot.slane %v3045, 2
  %v3196 = vsel %vm1136, %v3193, %v3195
  %v3197 = vrot.slane %v3046, 2
  %v3198 = vsel %vm1136, %v3195, %v3197
  %v3199 = vrot.slane %v3047, 2
  %v3200 = vrot.slane %v3048, 2
  %v3201 = vsel %vm1136, %v3199, %v3200
  %v3202 = vrot.slane %v3049, 2
  %v3203 = vsel %vm1136, %v3200, %v3202
  %v3204 = vrot.slane %v3050, 2
  %v3205 = vsel %vm1136, %v3202, %v3204
  %v3206 = vrot.slane %v3051, 2
  %v3207 = vrot.slane %v3052, 2
  %v3208 = vsel %vm1136, %v3206, %v3207
  %v3209 = vrot.slane %v3053, 2
  %v3210 = vsel %vm1136, %v3207, %v3209
  %v3211 = vrot.slane %v3054, 2
  %v3212 = vsel %vm1136, %v3209, %v3211
  %v3213 = vrot.slane %v3055, 2
  %v3214 = vrot.slane %v3056, 2
  %v3215 = vsel %vm1136, %v3213, %v3214
  %v3216 = vrot.slane %v3057, 2
  %v3217 = vsel %vm1136, %v3214, %v3216
  %v3218 = vrot.slane %v3058, 2
  %v3219 = vsel %vm1136, %v3216, %v3218
  %v3220 = vrot.slane %v3059, 2
  %v3221 = vrot.slane %v3060, 2
  %v3222 = vsel %vm1136, %v3220, %v3221
  %v3223 = vrot.slane %v3061, 2
  %v3224 = vsel %vm1136, %v3221, %v3223
  %v3225 = vrot.slane %v3062, 2
  %v3226 = vsel %vm1136, %v3223, %v3225
  %v3227 = vrot.slane %v3063, 2
  %v3228 = vrot.slane %v3064, 2
  %v3229 = vsel %vm1136, %v3227, %v3228
  %v3230 = vrot.slane %v3065, 2
  %v3231 = vsel %vm1136, %v3228, %v3230
  %v3232 = vrot.slane %v3066, 2
  %v3233 = vsel %vm1136, %v3230, %v3232
  %v3234 = vrot.slane %v3067, 2
  %v3235 = vrot.slane %v3068, 2
  %v3236 = vsel %vm1136, %v3234, %v3235
  %v3237 = vrot.slane %v3069, 2
  %v3238 = vsel %vm1136, %v3235, %v3237
  %v3239 = vrot.slane %v3070, 2
  %v3240 = vsel %vm1136, %v3237, %v3239
  %v3241 = vrot.slane %v3071, 2
  %v3242 = vrot.slane %v3072, 2
  %v3243 = vsel %vm1136, %v3241, %v3242
  %v3244 = vrot.slane %v3073, 2
  %v3245 = vsel %vm1136, %v3242, %v3244
  %v3246 = vrot.slane %v3074, 2
  %v3247 = vsel %vm1136, %v3244, %v3246
  %v3248 = vrot.slane %v3075, 2
  %v3249 = vrot.slane %v3076, 2
  %v3250 = vsel %vm1136, %v3248, %v3249
  %v3251 = vrot.slane %v3077, 2
  %v3252 = vsel %vm1136, %v3249, %v3251
  %v3253 = vrot.slane %v3078, 2
  %v3254 = vsel %vm1136, %v3251, %v3253
  %v3319 = vmax.f32 %v3015, %v3145
  %v3320 = vmax.f32 %v3016, %v3147
  %v3321 = vmax.f32 %v3017, %v3149
  %v3322 = vmax.f32 %v3018, %v3148
  %v3323 = vmax.f32 %v3019, %v3152
  %v3324 = vmax.f32 %v3020, %v3154
  %v3325 = vmax.f32 %v3021, %v3156
  %v3326 = vmax.f32 %v3022, %v3155
  %v3327 = vmax.f32 %v3023, %v3159
  %v3328 = vmax.f32 %v3024, %v3161
  %v3329 = vmax.f32 %v3025, %v3163
  %v3330 = vmax.f32 %v3026, %v3162
  %v3331 = vmax.f32 %v3027, %v3166
  %v3332 = vmax.f32 %v3028, %v3168
  %v3333 = vmax.f32 %v3029, %v3170
  %v3334 = vmax.f32 %v3030, %v3169
  %v3335 = vmax.f32 %v3031, %v3173
  %v3336 = vmax.f32 %v3032, %v3175
  %v3337 = vmax.f32 %v3033, %v3177
  %v3338 = vmax.f32 %v3034, %v3176
  %v3339 = vmax.f32 %v3035, %v3180
  %v3340 = vmax.f32 %v3036, %v3182
  %v3341 = vmax.f32 %v3037, %v3184
  %v3342 = vmax.f32 %v3038, %v3183
  %v3343 = vmax.f32 %v3039, %v3187
  %v3344 = vmax.f32 %v3040, %v3189
  %v3345 = vmax.f32 %v3041, %v3191
  %v3346 = vmax.f32 %v3042, %v3190
  %v3347 = vmax.f32 %v3043, %v3194
  %v3348 = vmax.f32 %v3044, %v3196
  %v3349 = vmax.f32 %v3045, %v3198
  %v3350 = vmax.f32 %v3046, %v3197
  %v3351 = vmax.f32 %v3047, %v3201
  %v3352 = vmax.f32 %v3048, %v3203
  %v3353 = vmax.f32 %v3049, %v3205
  %v3354 = vmax.f32 %v3050, %v3204
  %v3355 = vmax.f32 %v3051, %v3208
  %v3356 = vmax.f32 %v3052, %v3210
  %v3357 = vmax.f32 %v3053, %v3212
  %v3358 = vmax.f32 %v3054, %v3211
  %v3359 = vmax.f32 %v3055, %v3215
  %v3360 = vmax.f32 %v3056, %v3217
  %v3361 = vmax.f32 %v3057, %v3219
  %v3362 = vmax.f32 %v3058, %v3218
  %v3363 = vmax.f32 %v3059, %v3222
  %v3364 = vmax.f32 %v3060, %v3224
  %v3365 = vmax.f32 %v3061, %v3226
  %v3366 = vmax.f32 %v3062, %v3225
  %v3367 = vmax.f32 %v3063, %v3229
  %v3368 = vmax.f32 %v3064, %v3231
  %v3369 = vmax.f32 %v3065, %v3233
  %v3370 = vmax.f32 %v3066, %v3232
  %v3371 = vmax.f32 %v3067, %v3236
  %v3372 = vmax.f32 %v3068, %v3238
  %v3373 = vmax.f32 %v3069, %v3240
  %v3374 = vmax.f32 %v3070, %v3239
  %v3375 = vmax.f32 %v3071, %v3243
  %v3376 = vmax.f32 %v3072, %v3245
  %v3377 = vmax.f32 %v3073, %v3247
  %v3378 = vmax.f32 %v3074, %v3246
  %v3379 = vmax.f32 %v3075, %v3250
  %v3380 = vmax.f32 %v3076, %v3252
  %v3381 = vmax.f32 %v3077, %v3254
  %v3382 = vmax.f32 %v3078, %v3253
  %v3447 = vrot.slane %v3319, 4
  %v3448 = vrot.slane %v3320, 4
  %v3449 = vsel %vm2291, %v3447, %v3448
  %v3450 = vrot.slane %v3321, 4
  %v3451 = vsel %vm2291, %v3448, %v3450
  %v3452 = vrot.slane %v3322, 4
  %v3453 = vsel %vm2291, %v3450, %v3452
  %v3454 = vrot.slane %v3323, 4
  %v3455 = vrot.slane %v3324, 4
  %v3456 = vsel %vm2291, %v3454, %v3455
  %v3457 = vrot.slane %v3325, 4
  %v3458 = vsel %vm2291, %v3455, %v3457
  %v3459 = vrot.slane %v3326, 4
  %v3460 = vsel %vm2291, %v3457, %v3459
  %v3461 = vrot.slane %v3327, 4
  %v3462 = vrot.slane %v3328, 4
  %v3463 = vsel %vm2291, %v3461, %v3462
  %v3464 = vrot.slane %v3329, 4
  %v3465 = vsel %vm2291, %v3462, %v3464
  %v3466 = vrot.slane %v3330, 4
  %v3467 = vsel %vm2291, %v3464, %v3466
  %v3468 = vrot.slane %v3331, 4
  %v3469 = vrot.slane %v3332, 4
  %v3470 = vsel %vm2291, %v3468, %v3469
  %v3471 = vrot.slane %v3333, 4
  %v3472 = vsel %vm2291, %v3469, %v3471
  %v3473 = vrot.slane %v3334, 4
  %v3474 = vsel %vm2291, %v3471, %v3473
  %v3475 = vrot.slane %v3335, 4
  %v3476 = vrot.slane %v3336, 4
  %v3477 = vsel %vm2291, %v3475, %v3476
  %v3478 = vrot.slane %v3337, 4
  %v3479 = vsel %vm2291, %v3476, %v3478
  %v3480 = vrot.slane %v3338, 4
  %v3481 = vsel %vm2291, %v3478, %v3480
  %v3482 = vrot.slane %v3339, 4
  %v3483 = vrot.slane %v3340, 4
  %v3484 = vsel %vm2291, %v3482, %v3483
  %v3485 = vrot.slane %v3341, 4
  %v3486 = vsel %vm2291, %v3483, %v3485
  %v3487 = vrot.slane %v3342, 4
  %v3488 = vsel %vm2291, %v3485, %v3487
  %v3489 = vrot.slane %v3343, 4
  %v3490 = vrot.slane %v3344, 4
  %v3491 = vsel %vm2291, %v3489, %v3490
  %v3492 = vrot.slane %v3345, 4
  %v3493 = vsel %vm2291, %v3490, %v3492
  %v3494 = vrot.slane %v3346, 4
  %v3495 = vsel %vm2291, %v3492, %v3494
  %v3496 = vrot.slane %v3347, 4
  %v3497 = vrot.slane %v3348, 4
  %v3498 = vsel %vm2291, %v3496, %v3497
  %v3499 = vrot.slane %v3349, 4
  %v3500 = vsel %vm2291, %v3497, %v3499
  %v3501 = vrot.slane %v3350, 4
  %v3502 = vsel %vm2291, %v3499, %v3501
  %v3503 = vrot.slane %v3351, 4
  %v3504 = vrot.slane %v3352, 4
  %v3505 = vsel %vm2291, %v3503, %v3504
  %v3506 = vrot.slane %v3353, 4
  %v3507 = vsel %vm2291, %v3504, %v3506
  %v3508 = vrot.slane %v3354, 4
  %v3509 = vsel %vm2291, %v3506, %v3508
  %v3510 = vrot.slane %v3355, 4
  %v3511 = vrot.slane %v3356, 4
  %v3512 = vsel %vm2291, %v3510, %v3511
  %v3513 = vrot.slane %v3357, 4
  %v3514 = vsel %vm2291, %v3511, %v3513
  %v3515 = vrot.slane %v3358, 4
  %v3516 = vsel %vm2291, %v3513, %v3515
  %v3517 = vrot.slane %v3359, 4
  %v3518 = vrot.slane %v3360, 4
  %v3519 = vsel %vm2291, %v3517, %v3518
  %v3520 = vrot.slane %v3361, 4
  %v3521 = vsel %vm2291, %v3518, %v3520
  %v3522 = vrot.slane %v3362, 4
  %v3523 = vsel %vm2291, %v3520, %v3522
  %v3524 = vrot.slane %v3363, 4
  %v3525 = vrot.slane %v3364, 4
  %v3526 = vsel %vm2291, %v3524, %v3525
  %v3527 = vrot.slane %v3365, 4
  %v3528 = vsel %vm2291, %v3525, %v3527
  %v3529 = vrot.slane %v3366, 4
  %v3530 = vsel %vm2291, %v3527, %v3529
  %v3531 = vrot.slane %v3367, 4
  %v3532 = vrot.slane %v3368, 4
  %v3533 = vsel %vm2291, %v3531, %v3532
  %v3534 = vrot.slane %v3369, 4
  %v3535 = vsel %vm2291, %v3532, %v3534
  %v3536 = vrot.slane %v3370, 4
  %v3537 = vsel %vm2291, %v3534, %v3536
  %v3538 = vrot.slane %v3371, 4
  %v3539 = vrot.slane %v3372, 4
  %v3540 = vsel %vm2291, %v3538, %v3539
  %v3541 = vrot.slane %v3373, 4
  %v3542 = vsel %vm2291, %v3539, %v3541
  %v3543 = vrot.slane %v3374, 4
  %v3544 = vsel %vm2291, %v3541, %v3543
  %v3545 = vrot.slane %v3375, 4
  %v3546 = vrot.slane %v3376, 4
  %v3547 = vsel %vm2291, %v3545, %v3546
  %v3548 = vrot.slane %v3377, 4
  %v3549 = vsel %vm2291, %v3546, %v3548
  %v3550 = vrot.slane %v3378, 4
  %v3551 = vsel %vm2291, %v3548, %v3550
  %v3552 = vrot.slane %v3379, 4
  %v3553 = vrot.slane %v3380, 4
  %v3554 = vsel %vm2291, %v3552, %v3553
  %v3555 = vrot.slane %v3381, 4
  %v3556 = vsel %vm2291, %v3553, %v3555
  %v3557 = vrot.slane %v3382, 4
  %v3558 = vsel %vm2291, %v3555, %v3557
  %v3607 = vmax.f32 %v3319, %v3449
  %v3608 = vmax.f32 %v3320, %v3451
  %v3609 = vmax.f32 %v3321, %v3453
  %v3610 = vmax.f32 %v3323, %v3456
  %v3611 = vmax.f32 %v3324, %v3458
  %v3612 = vmax.f32 %v3325, %v3460
  %v3613 = vmax.f32 %v3327, %v3463
  %v3614 = vmax.f32 %v3328, %v3465
  %v3615 = vmax.f32 %v3329, %v3467
  %v3616 = vmax.f32 %v3331, %v3470
  %v3617 = vmax.f32 %v3332, %v3472
  %v3618 = vmax.f32 %v3333, %v3474
  %v3619 = vmax.f32 %v3335, %v3477
  %v3620 = vmax.f32 %v3336, %v3479
  %v3621 = vmax.f32 %v3337, %v3481
  %v3622 = vmax.f32 %v3339, %v3484
  %v3623 = vmax.f32 %v3340, %v3486
  %v3624 = vmax.f32 %v3341, %v3488
  %v3625 = vmax.f32 %v3343, %v3491
  %v3626 = vmax.f32 %v3344, %v3493
  %v3627 = vmax.f32 %v3345, %v3495
  %v3628 = vmax.f32 %v3347, %v3498
  %v3629 = vmax.f32 %v3348, %v3500
  %v3630 = vmax.f32 %v3349, %v3502
  %v3631 = vmax.f32 %v3351, %v3505
  %v3632 = vmax.f32 %v3352, %v3507
  %v3633 = vmax.f32 %v3353, %v3509
  %v3634 = vmax.f32 %v3355, %v3512
  %v3635 = vmax.f32 %v3356, %v3514
  %v3636 = vmax.f32 %v3357, %v3516
  %v3637 = vmax.f32 %v3359, %v3519
  %v3638 = vmax.f32 %v3360, %v3521
  %v3639 = vmax.f32 %v3361, %v3523
  %v3640 = vmax.f32 %v3363, %v3526
  %v3641 = vmax.f32 %v3364, %v3528
  %v3642 = vmax.f32 %v3365, %v3530
  %v3643 = vmax.f32 %v3367, %v3533
  %v3644 = vmax.f32 %v3368, %v3535
  %v3645 = vmax.f32 %v3369, %v3537
  %v3646 = vmax.f32 %v3371, %v3540
  %v3647 = vmax.f32 %v3372, %v3542
  %v3648 = vmax.f32 %v3373, %v3544
  %v3649 = vmax.f32 %v3375, %v3547
  %v3650 = vmax.f32 %v3376, %v3549
  %v3651 = vmax.f32 %v3377, %v3551
  %v3652 = vmax.f32 %v3379, %v3554
  %v3653 = vmax.f32 %v3380, %v3556
  %v3654 = vmax.f32 %v3381, %v3558
  %vm3703 = vcmask 1042432
  %v3704 = vrot.slane %v3607, 5
  %v3705 = vrot.slane %v3608, 5
  %v3706 = vsel %vm3703, %v3704, %v3705
  %v3707 = vrot.slane %v3609, 5
  %v3708 = vsel %vm3703, %v3705, %v3707
  %v3709 = vrot.slane %v3610, 5
  %v3710 = vrot.slane %v3611, 5
  %v3711 = vsel %vm3703, %v3709, %v3710
  %v3712 = vrot.slane %v3612, 5
  %v3713 = vsel %vm3703, %v3710, %v3712
  %v3714 = vrot.slane %v3613, 5
  %v3715 = vrot.slane %v3614, 5
  %v3716 = vsel %vm3703, %v3714, %v3715
  %v3717 = vrot.slane %v3615, 5
  %v3718 = vsel %vm3703, %v3715, %v3717
  %v3719 = vrot.slane %v3616, 5
  %v3720 = vrot.slane %v3617, 5
  %v3721 = vsel %vm3703, %v3719, %v3720
  %v3722 = vrot.slane %v3618, 5
  %v3723 = vsel %vm3703, %v3720, %v3722
  %v3724 = vrot.slane %v3619, 5
  %v3725 = vrot.slane %v3620, 5
  %v3726 = vsel %vm3703, %v3724, %v3725
  %v3727 = vrot.slane %v3621, 5
  %v3728 = vsel %vm3703, %v3725, %v3727
  %v3729 = vrot.slane %v3622, 5
  %v3730 = vrot.slane %v3623, 5
  %v3731 = vsel %vm3703, %v3729, %v3730
  %v3732 = vrot.slane %v3624, 5
  %v3733 = vsel %vm3703, %v3730, %v3732
  %v3734 = vrot.slane %v3625, 5
  %v3735 = vrot.slane %v3626, 5
  %v3736 = vsel %vm3703, %v3734, %v3735
  %v3737 = vrot.slane %v3627, 5
  %v3738 = vsel %vm3703, %v3735, %v3737
  %v3739 = vrot.slane %v3628, 5
  %v3740 = vrot.slane %v3629, 5
  %v3741 = vsel %vm3703, %v3739, %v3740
  %v3742 = vrot.slane %v3630, 5
  %v3743 = vsel %vm3703, %v3740, %v3742
  %v3744 = vrot.slane %v3631, 5
  %v3745 = vrot.slane %v3632, 5
  %v3746 = vsel %vm3703, %v3744, %v3745
  %v3747 = vrot.slane %v3633, 5
  %v3748 = vsel %vm3703, %v3745, %v3747
  %v3749 = vrot.slane %v3634, 5
  %v3750 = vrot.slane %v3635, 5
  %v3751 = vsel %vm3703, %v3749, %v3750
  %v3752 = vrot.slane %v3636, 5
  %v3753 = vsel %vm3703, %v3750, %v3752
  %v3754 = vrot.slane %v3637, 5
  %v3755 = vrot.slane %v3638, 5
  %v3756 = vsel %vm3703, %v3754, %v3755
  %v3757 = vrot.slane %v3639, 5
  %v3758 = vsel %vm3703, %v3755, %v3757
  %v3759 = vrot.slane %v3640, 5
  %v3760 = vrot.slane %v3641, 5
  %v3761 = vsel %vm3703, %v3759, %v3760
  %v3762 = vrot.slane %v3642, 5
  %v3763 = vsel %vm3703, %v3760, %v3762
  %v3764 = vrot.slane %v3643, 5
  %v3765 = vrot.slane %v3644, 5
  %v3766 = vsel %vm3703, %v3764, %v3765
  %v3767 = vrot.slane %v3645, 5
  %v3768 = vsel %vm3703, %v3765, %v3767
  %v3769 = vrot.slane %v3646, 5
  %v3770 = vrot.slane %v3647, 5
  %v3771 = vsel %vm3703, %v3769, %v3770
  %v3772 = vrot.slane %v3648, 5
  %v3773 = vsel %vm3703, %v3770, %v3772
  %v3774 = vrot.slane %v3649, 5
  %v3775 = vrot.slane %v3650, 5
  %v3776 = vsel %vm3703, %v3774, %v3775
  %v3777 = vrot.slane %v3651, 5
  %v3778 = vsel %vm3703, %v3775, %v3777
  %v3779 = vrot.slane %v3652, 5
  %v3780 = vrot.slane %v3653, 5
  %v3781 = vsel %vm3703, %v3779, %v3780
  %v3782 = vrot.slane %v3654, 5
  %v3783 = vsel %vm3703, %v3780, %v3782
  %v3832 = vmax.f32 %v3607, %v3706
  %v3833 = vmax.f32 %v3608, %v3708
  %v3834 = vmax.f32 %v3609, %v3707
  %v3835 = vmax.f32 %v3610, %v3711
  %v3836 = vmax.f32 %v3611, %v3713
  %v3837 = vmax.f32 %v3612, %v3712
  %v3838 = vmax.f32 %v3613, %v3716
  %v3839 = vmax.f32 %v3614, %v3718
  %v3840 = vmax.f32 %v3615, %v3717
  %v3841 = vmax.f32 %v3616, %v3721
  %v3842 = vmax.f32 %v3617, %v3723
  %v3843 = vmax.f32 %v3618, %v3722
  %v3844 = vmax.f32 %v3619, %v3726
  %v3845 = vmax.f32 %v3620, %v3728
  %v3846 = vmax.f32 %v3621, %v3727
  %v3847 = vmax.f32 %v3622, %v3731
  %v3848 = vmax.f32 %v3623, %v3733
  %v3849 = vmax.f32 %v3624, %v3732
  %v3850 = vmax.f32 %v3625, %v3736
  %v3851 = vmax.f32 %v3626, %v3738
  %v3852 = vmax.f32 %v3627, %v3737
  %v3853 = vmax.f32 %v3628, %v3741
  %v3854 = vmax.f32 %v3629, %v3743
  %v3855 = vmax.f32 %v3630, %v3742
  %v3856 = vmax.f32 %v3631, %v3746
  %v3857 = vmax.f32 %v3632, %v3748
  %v3858 = vmax.f32 %v3633, %v3747
  %v3859 = vmax.f32 %v3634, %v3751
  %v3860 = vmax.f32 %v3635, %v3753
  %v3861 = vmax.f32 %v3636, %v3752
  %v3862 = vmax.f32 %v3637, %v3756
  %v3863 = vmax.f32 %v3638, %v3758
  %v3864 = vmax.f32 %v3639, %v3757
  %v3865 = vmax.f32 %v3640, %v3761
  %v3866 = vmax.f32 %v3641, %v3763
  %v3867 = vmax.f32 %v3642, %v3762
  %v3868 = vmax.f32 %v3643, %v3766
  %v3869 = vmax.f32 %v3644, %v3768
  %v3870 = vmax.f32 %v3645, %v3767
  %v3871 = vmax.f32 %v3646, %v3771
  %v3872 = vmax.f32 %v3647, %v3773
  %v3873 = vmax.f32 %v3648, %v3772
  %v3874 = vmax.f32 %v3649, %v3776
  %v3875 = vmax.f32 %v3650, %v3778
  %v3876 = vmax.f32 %v3651, %v3777
  %v3877 = vmax.f32 %v3652, %v3781
  %v3878 = vmax.f32 %v3653, %v3783
  %v3879 = vmax.f32 %v3654, %v3782
  %s3880 = scalar_lea.vmem %s1, 512
  %vm3881 = vcmask 64514
  %3882 = vst.msk [vmem:[%s3880 - $0x2] sm:$0xfc] %vm3881, %v3832
  %3883 = vst.msk [vmem:[%s3880 + $0x6] sm:$0xff] %vm40, %v3833
  %vm3884 = vcmask 58368
  %3885 = vst.msk [vmem:[%s3880 + $0xe] sm:$0x3] %vm3884, %v3834
  %3886 = vst.msk [vmem:[%s3880 + $0xe] sm:$0xfc] %vm3881, %v3835
  %3887 = vst.msk [vmem:[%s3880 + $0x16] sm:$0xff] %vm40, %v3836
  %3888 = vst.msk [vmem:[%s3880 + $0x1e] sm:$0x3] %vm3884, %v3837
  %3889 = vst.msk [vmem:[%s3880 + $0x1e] sm:$0xfc] %vm3881, %v3838
  %3890 = vst.msk [vmem:[%s3880 + $0x26] sm:$0xff] %vm40, %v3839
  %3891 = vst.msk [vmem:[%s3880 + $0x2e] sm:$0x3] %vm3884, %v3840
  %3892 = vst.msk [vmem:[%s3880 + $0x2e] sm:$0xfc] %vm3881, %v3841
  %3893 = vst.msk [vmem:[%s3880 + $0x36] sm:$0xff] %vm40, %v3842
  %3894 = vst.msk [vmem:[%s3880 + $0x3e] sm:$0x3] %vm3884, %v3843
  %3895 = vst.msk [vmem:[%s3880 + $0x3e] sm:$0xfc] %vm3881, %v3844
  %3896 = vst.msk [vmem:[%s3880 + $0x46] sm:$0xff] %vm40, %v3845
  %3897 = vst.msk [vmem:[%s3880 + $0x4e] sm:$0x3] %vm3884, %v3846
  %3898 = vst.msk [vmem:[%s3880 + $0x4e] sm:$0xfc] %vm3881, %v3847
  %3899 = vst.msk [vmem:[%s3880 + $0x56] sm:$0xff] %vm40, %v3848
  %3900 = vst.msk [vmem:[%s3880 + $0x5e] sm:$0x3] %vm3884, %v3849
  %3901 = vst.msk [vmem:[%s3880 + $0x5e] sm:$0xfc] %vm3881, %v3850
  %3902 = vst.msk [vmem:[%s3880 + $0x66] sm:$0xff] %vm40, %v3851
  %3903 = vst.msk [vmem:[%s3880 + $0x6e] sm:$0x3] %vm3884, %v3852
  %3904 = vst.msk [vmem:[%s3880 + $0x6e] sm:$0xfc] %vm3881, %v3853
  %3905 = vst.msk [vmem:[%s3880 + $0x76] sm:$0xff] %vm40, %v3854
  %3906 = vst.msk [vmem:[%s3880 + $0x7e] sm:$0x3] %vm3884, %v3855
  %3907 = vst.msk [vmem:[%s3880 + $0x7e] sm:$0xfc] %vm3881, %v3856
  %3908 = vst.msk [vmem:[%s3880 + $0x86] sm:$0xff] %vm40, %v3857
  %3909 = vst.msk [vmem:[%s3880 + $0x8e] sm:$0x3] %vm3884, %v3858
  %3910 = vst.msk [vmem:[%s3880 + $0x8e] sm:$0xfc] %vm3881, %v3859
  %3911 = vst.msk [vmem:[%s3880 + $0x96] sm:$0xff] %vm40, %v3860
  %3912 = vst.msk [vmem:[%s3880 + $0x9e] sm:$0x3] %vm3884, %v3861
  %3913 = vst.msk [vmem:[%s3880 + $0x9e] sm:$0xfc] %vm3881, %v3862
  %3914 = vst.msk [vmem:[%s3880 + $0xa6] sm:$0xff] %vm40, %v3863
  %3915 = vst.msk [vmem:[%s3880 + $0xae] sm:$0x3] %vm3884, %v3864
  %3916 = vst.msk [vmem:[%s3880 + $0xae] sm:$0xfc] %vm3881, %v3865
  %3917 = vst.msk [vmem:[%s3880 + $0xb6] sm:$0xff] %vm40, %v3866
  %3918 = vst.msk [vmem:[%s3880 + $0xbe] sm:$0x3] %vm3884, %v3867
  %3919 = vst.msk [vmem:[%s3880 + $0xbe] sm:$0xfc] %vm3881, %v3868
  %3920 = vst.msk [vmem:[%s3880 + $0xc6] sm:$0xff] %vm40, %v3869
  %3921 = vst.msk [vmem:[%s3880 + $0xce] sm:$0x3] %vm3884, %v3870
  %3922 = vst.msk [vmem:[%s3880 + $0xce] sm:$0xfc] %vm3881, %v3871
  %3923 = vst.msk [vmem:[%s3880 + $0xd6] sm:$0xff] %vm40, %v3872
  %3924 = vst.msk [vmem:[%s3880 + $0xde] sm:$0x3] %vm3884, %v3873
  %3925 = vst.msk [vmem:[%s3880 + $0xde] sm:$0xfc] %vm3881, %v3874
  %3926 = vst.msk [vmem:[%s3880 + $0xe6] sm:$0xff] %vm40, %v3875
  %3927 = vst.msk [vmem:[%s3880 + $0xee] sm:$0x3] %vm3884, %v3876
  %3928 = vst.msk [vmem:[%s3880 + $0xee] sm:$0xfc] %vm3881, %v3877
  %3929 = vst.msk [vmem:[%s3880 + $0xf6] sm:$0xff] %vm40, %v3878
  %3930 = vst.msk [vmem:[%s3880 + $0xfe] sm:$0x3] %vm3884, %v3879
  // Predicated region
  $region6: #{spp.1} parent=0 // pred_check
    _
  $region7: #{spp.1} parent=0 // pred_check_branch
    %3932 = sbr.rel (0) target = $region9
  $region8: #{spp.1} parent=0 // pred_region
    _
  $region9: #{spp.1} parent=0 // pred_fallthru
    _
  // Predicated region
  $region10: #{spp.1} parent=0 // pred_check
    _
  $region11: #{spp.1} parent=0 // pred_check_branch
    %3934 = sbr.rel (0) target = $region13
  $region12: #{spp.1} parent=0 // pred_region
    _
  $region13: #{spp.1} parent=0 // pred_fallthru
    _

</llo_original>
